<compile_context>
chip_gen: v5e
topology: v5e:2x2
jax: 0.10.0
libtpu: 0.0.40
codegen_flags: <defaults>
</compile_context>

<pallas_src>
import functools

import jax
import jax.numpy as jnp
from jax.experimental import pallas as pl
from jax.experimental.pallas import tpu as pltpu


# ----------------------------- helpers -----------------------------

def _round_up(x, m):
    return ((x + m - 1) // m) * m


def _pad_rows(a, rows_pad, value=0):
    pad = rows_pad - a.shape[0]
    if pad == 0:
        return a
    widths = [(0, pad)] + [(0, 0)] * (a.ndim - 1)
    return jnp.pad(a, widths, constant_values=value)


def _pad_2d(a, rows, cols):
    return jnp.pad(a, ((0, rows - a.shape[0]), (0, cols - a.shape[1])))


def _node_tile_for(n):
    # Single full tile (8-aligned) for small graphs, otherwise 512-row tiles
    # (multiple of 128 so both (tile, d) and (1, tile) blocks are aligned).
    return min(512, _round_up(n, 8))


def _edge_tile_for(e):
    return min(1024, _round_up(e, 128))


# ----------------------------- Pallas kernels -----------------------------

def _lin_in_kernel(x_ref, w_ref, b_ref, o_ref):
    # o = x @ w + b   (bf16 MXU operands, f32 accumulation)
    o_ref[...] = (
        jnp.dot(x_ref[...].astype(jnp.bfloat16), w_ref[...],
                preferred_element_type=jnp.float32)
        + b_ref[...]
    )


def _mpnn_layer_kernel(etf_ref, etl_ref,                     # scalar prefetch
                       dst_ref, hi_ref, hj_ref, ea_ref, h_ref,
                       w_ref, we_ref, rv_ref,
                       o_ref, acc_ref):
    # One fused MPNN layer: message MLP psi -> scatter-add aggregation ->
    # update MLP phi -> residual, all per (node tile, edge tile) grid step.
    # w_ref is a (6, d, d) stack: [msg W1_hi, msg W1_hj, msg W2,
    #                              upd W1_h,  upd W1_aggr, upd W2]
    # rv_ref rows 0..3 are the (BN-folded) biases b1_msg, b2_msg, b1_upd, b2_upd.
    ni = pl.program_id(0)
    ei = pl.program_id(1)

    @pl.when(ei == 0)
    def _():
        acc_ref[...] = jnp.zeros_like(acc_ref)

    # Edges are sorted by destination, so only edge tiles in
    # [etf[ni], etl[ni]] can contribute to this node tile; everything else is
    # skipped (and not re-DMA'd, because the index_map clamps into that range).
    @pl.when((ei >= etf_ref[ni]) & (ei <= etl_ref[ni]))
    def _():
        # message MLP psi(cat([h_i, h_j, e_ij])) with the concat eliminated:
        # dot(cat(a,b,c), W1) == dot(a,W1a) + dot(b,W1b) + dot(c,W1c).
        y = jnp.dot(hi_ref[...], w_ref[0], preferred_element_type=jnp.float32)
        y = y + jnp.dot(hj_ref[...], w_ref[1], preferred_element_type=jnp.float32)
        y = y + jnp.dot(ea_ref[...], we_ref[...], preferred_element_type=jnp.float32)
        y = jnp.maximum(y + rv_ref[0:1, :], 0.0)             # Linear+BN folded, ReLU
        msg = jnp.dot(y.astype(jnp.bfloat16), w_ref[2],
                      preferred_element_type=jnp.float32)
        msg = jnp.maximum(msg + rv_ref[1:2, :], 0.0)

        # scatter-add into this node tile: in-kernel one-hot (local dst ids,
        # iota built once, ni*tn subtracted on the (1, te) row) + MXU matmul.
        tn = acc_ref.shape[0]
        te = msg.shape[0]
        dst_local = dst_ref[...] - ni * tn                   # (1, te)
        onehot = (jax.lax.broadcasted_iota(jnp.int32, (tn, te), 0)
                  == dst_local).astype(jnp.bfloat16)         # exact 0/1
        acc_ref[...] += jnp.dot(onehot, msg.astype(jnp.bfloat16),
                                preferred_element_type=jnp.float32)

    @pl.when(ei == pl.num_programs(1) - 1)
    def _():
        # update MLP phi(cat([h, aggr])) with split W1, then fused residual.
        h = h_ref[...]
        y = jnp.dot(h.astype(jnp.bfloat16), w_ref[3],
                    preferred_element_type=jnp.float32)
        y = y + jnp.dot(acc_ref[...].astype(jnp.bfloat16), w_ref[4],
                        preferred_element_type=jnp.float32)
        y = jnp.maximum(y + rv_ref[2:3, :], 0.0)
        y = jnp.dot(y.astype(jnp.bfloat16), w_ref[5],
                    preferred_element_type=jnp.float32)
        y = jnp.maximum(y + rv_ref[3:4, :], 0.0)
        o_ref[...] = h + y                                   # fused residual


def _pool_pred_kernel(batch_ref, h_ref, invc_ref, wp_ref, bp_ref,
                      o_ref, acc_ref):
    # global_mean_pool (streaming in-kernel one-hot accumulate, f32) + lin_pred.
    ti = pl.program_id(0)

    @pl.when(ti == 0)
    def _():
        acc_ref[...] = jnp.zeros_like(acc_ref)

    bp = acc_ref.shape[0]
    tn = h_ref.shape[0]
    onehot = (jax.lax.broadcasted_iota(jnp.int32, (bp, tn), 0)
              == batch_ref[...]).astype(jnp.float32)
    acc_ref[...] += jnp.dot(onehot, h_ref[...],
                            preferred_element_type=jnp.float32)

    @pl.when(ti == pl.num_programs(0) - 1)
    def _():
        h_graph = acc_ref[...] * invc_ref[...]               # mean = sum / count
        o_ref[...] = (
            jnp.dot(h_graph.astype(jnp.bfloat16), wp_ref[...],
                    preferred_element_type=jnp.float32)
            + bp_ref[...]
        )


# ----------------------------- Pallas wrappers -----------------------------

def pallas_lin_in(x, w_bf16, b, node_tile):
    n_pad, din = x.shape
    d_pad = w_bf16.shape[1]
    grid = (n_pad // node_tile,)
    return pl.pallas_call(
        _lin_in_kernel,
        out_shape=jax.ShapeDtypeStruct((n_pad, d_pad), jnp.float32),
        grid=grid,
        in_specs=[
            pl.BlockSpec((node_tile, din), lambda i: (i, 0)),
            pl.BlockSpec((din, d_pad), lambda i: (0, 0)),
            pl.BlockSpec((1, d_pad), lambda i: (0, 0)),
        ],
        out_specs=pl.BlockSpec((node_tile, d_pad), lambda i: (i, 0)),
        compiler_params=pltpu.CompilerParams(dimension_semantics=("parallel",)),
    )(x, w_bf16, b)


def pallas_mpnn_layer(et_first, et_last, dst_row, h_i, h_j, ea_s, h,
                      w_stack, w_msg_e, rowvec, node_tile, edge_tile):
    n_pad, d_pad = h.shape
    e_pad = h_i.shape[0]
    de = ea_s.shape[1]
    n_tiles = n_pad // node_tile
    e_tiles = e_pad // edge_tile

    def eblk(ni, ei, etf, etl):
        # Clamp the edge-tile index into this node tile's overlap range so
        # skipped steps re-use the already-resident block (no extra DMA).
        lo = etf[ni]
        hi = jnp.maximum(etl[ni], lo)
        return jnp.minimum(jnp.maximum(ei, lo), hi)

    grid_spec = pltpu.PrefetchScalarGridSpec(
        num_scalar_prefetch=2,
        grid=(n_tiles, e_tiles),
        in_specs=[
            pl.BlockSpec((1, edge_tile),
                         lambda ni, ei, etf, etl: (0, eblk(ni, ei, etf, etl))),
            pl.BlockSpec((edge_tile, d_pad),
                         lambda ni, ei, etf, etl: (eblk(ni, ei, etf, etl), 0)),
            pl.BlockSpec((edge_tile, d_pad),
                         lambda ni, ei, etf, etl: (eblk(ni, ei, etf, etl), 0)),
            pl.BlockSpec((edge_tile, de),
                         lambda ni, ei, etf, etl: (eblk(ni, ei, etf, etl), 0)),
            pl.BlockSpec((node_tile, d_pad), lambda ni, ei, etf, etl: (ni, 0)),
            pl.BlockSpec((6, d_pad, d_pad), lambda ni, ei, etf, etl: (0, 0, 0)),
            pl.BlockSpec((de, d_pad), lambda ni, ei, etf, etl: (0, 0)),
            pl.BlockSpec((8, d_pad), lambda ni, ei, etf, etl: (0, 0)),
        ],
        out_specs=pl.BlockSpec((node_tile, d_pad),
                               lambda ni, ei, etf, etl: (ni, 0)),
        scratch_shapes=[pltpu.VMEM((node_tile, d_pad), jnp.float32)],
    )
    return pl.pallas_call(
        _mpnn_layer_kernel,
        out_shape=jax.ShapeDtypeStruct((n_pad, d_pad), jnp.float32),
        grid_spec=grid_spec,
        compiler_params=pltpu.CompilerParams(
            dimension_semantics=("parallel", "arbitrary"),
            # v5e's scoped-VMEM default is 16 MiB; stay under v7x's 64 MiB.
            vmem_limit_bytes=48 * 1024 * 1024),
    )(et_first, et_last, dst_row, h_i, h_j, ea_s, h, w_stack, w_msg_e, rowvec)


def pallas_pool_pred(batch_row, h, inv_counts, wp_bf16, bp, node_tile):
    n_pad, d_pad = h.shape
    b_pad = inv_counts.shape[0]
    dout = wp_bf16.shape[1]
    grid = (n_pad // node_tile,)
    # TODO(synk): on v7x give this a leading size-2 parallel axis with
    # per-core partial sums; as written the (tiny) pooling kernel uses one TC.
    return pl.pallas_call(
        _pool_pred_kernel,
        out_shape=jax.ShapeDtypeStruct((b_pad, dout), jnp.float32),
        grid=grid,
        in_specs=[
            pl.BlockSpec((1, node_tile), lambda i: (0, i)),   # batch ids (int32)
            pl.BlockSpec((node_tile, d_pad), lambda i: (i, 0)),
            pl.BlockSpec((b_pad, 1), lambda i: (0, 0)),       # 1/count per graph
            pl.BlockSpec((d_pad, dout), lambda i: (0, 0)),
            pl.BlockSpec((1, dout), lambda i: (0, 0)),
        ],
        out_specs=pl.BlockSpec((b_pad, dout), lambda i: (0, 0)),
        scratch_shapes=[pltpu.VMEM((b_pad, d_pad), jnp.float32)],
        compiler_params=pltpu.CompilerParams(dimension_semantics=("arbitrary",)),
    )(batch_row, h, inv_counts, wp_bf16, bp)


# ----------------------------- Parameter init -----------------------------

def init_linear(key, din, dout):
    """PyTorch nn.Linear default init: U(-1/sqrt(fan_in), 1/sqrt(fan_in))."""
    k1, k2 = jax.random.split(key)
    bound = 1.0 / float(din) ** 0.5
    w = jax.random.uniform(k1, (din, dout), jnp.float32, -bound, bound)
    b = jax.random.uniform(k2, (dout,), jnp.float32, -bound, bound)
    return w, b


def init_bn(d, eps=1e-5):
    """BatchNorm1d defaults (gamma=1, beta=0, mean=0, var=1) in eval mode,
    expressed as per-feature scale/shift."""
    gamma = jnp.ones((d,), jnp.float32)
    beta = jnp.zeros((d,), jnp.float32)
    running_mean = jnp.zeros((d,), jnp.float32)
    running_var = jnp.ones((d,), jnp.float32)
    scale = gamma / jnp.sqrt(running_var + eps)
    shift = beta - running_mean * scale
    return scale, shift


def init_mlp2(key, din, d):
    k1, k2 = jax.random.split(key)
    w1, b1 = init_linear(k1, din, d)
    s1, t1 = init_bn(d)
    w2, b2 = init_linear(k2, d, d)
    s2, t2 = init_bn(d)
    return (w1, b1, s1, t1, w2, b2, s2, t2)


def init_mpnn_model(key, num_layers=1, emb_dim=32, in_dim=11, edge_dim=4, out_dim=1):
    keys = jax.random.split(key, 2 + 2 * num_layers)
    params = {
        "lin_in": init_linear(keys[0], in_dim, emb_dim),
        "lin_pred": init_linear(keys[1], emb_dim, out_dim),
        "convs": [],
    }
    for l in range(num_layers):
        params["convs"].append({
            "msg": init_mlp2(keys[2 + 2 * l], 2 * emb_dim + edge_dim, emb_dim),
            "upd": init_mlp2(keys[3 + 2 * l], 2 * emb_dim, emb_dim),
        })
    return params


def _fold_bn(w, b, s, t):
    # BN(x @ W + b) == x @ (W*s) + (b*s + t)   (eval mode, per-feature affine)
    return w * s[None, :], b * s + t


def prepare_params(params):
    """One-time (outside jit) parameter prep: fold eval-mode BatchNorm into the
    preceding Linear, split the concat weights, zero-pad the hidden dim to a
    full 128-lane width, cast MXU operands to bf16 and stack the per-layer
    weight matrices / biases into single operands."""
    w_in, b_in = params["lin_in"]
    in_dim, d = w_in.shape
    d_pad = _round_up(d, 128)
    w_pred, b_pred = params["lin_pred"]
    out_dim = w_pred.shape[1]

    prepped = {
        "lin_in_w": _pad_2d(w_in, in_dim, d_pad).astype(jnp.bfloat16),
        "lin_in_b": _pad_2d(b_in.reshape(1, -1), 1, d_pad),
        "lin_pred_w": _pad_2d(w_pred, d_pad, out_dim).astype(jnp.bfloat16),
        "lin_pred_b": b_pred.reshape(1, -1),
        "layers": [],
    }
    pad_sq = lambda w: _pad_2d(w, d_pad, d_pad)
    for lp in params["convs"]:
        (mw1, mb1, ms1, mt1, mw2, mb2, ms2, mt2) = lp["msg"]
        (uw1, ub1, us1, ut1, uw2, ub2, us2, ut2) = lp["upd"]
        de = mw1.shape[0] - 2 * d

        mw1f, mb1f = _fold_bn(mw1, mb1, ms1, mt1)
        mw2f, mb2f = _fold_bn(mw2, mb2, ms2, mt2)
        uw1f, ub1f = _fold_bn(uw1, ub1, us1, ut1)
        uw2f, ub2f = _fold_bn(uw2, ub2, us2, ut2)

        w_stack = jnp.stack([
            pad_sq(mw1f[:d]),         # msg W1 block for h_i
            pad_sq(mw1f[d:2 * d]),    # msg W1 block for h_j
            pad_sq(mw2f),             # msg W2
            pad_sq(uw1f[:d]),         # upd W1 block for h
            pad_sq(uw1f[d:2 * d]),    # upd W1 block for aggr
            pad_sq(uw2f),             # upd W2
        ]).astype(jnp.bfloat16)
        w_msg_e = _pad_2d(mw1f[2 * d:], de, d_pad).astype(jnp.bfloat16)

        rowvec = jnp.zeros((8, d_pad), jnp.float32)
        rowvec = rowvec.at[0, :d].set(mb1f).at[1, :d].set(mb2f)
        rowvec = rowvec.at[2, :d].set(ub1f).at[3, :d].set(ub2f)

        prepped["layers"].append(
            {"w_stack": w_stack, "w_msg_e": w_msg_e, "rowvec": rowvec})
    return prepped


# ----------------------------- Model forward -----------------------------

@functools.partial(jax.jit, static_argnames=("num_graphs",))
def mpnn_model_forward(prepped, x, pos, edge_index, edge_attr, batch, num_graphs):
    # NOTE: the PyTorch forward computes features_with_pos = cat(x, pos) but
    # never uses it, so the dead concat is skipped here (semantics unchanged).
    del pos

    n = x.shape[0]
    e = edge_index.shape[1]
    d_pad = prepped["lin_in_w"].shape[1]
    b = num_graphs

    node_tile = _node_tile_for(n)
    n_pad = _round_up(n, node_tile)
    edge_tile = _edge_tile_for(e)
    e_pad = _round_up(e, edge_tile)
    b_pad = _round_up(b, 8)
    n_tiles = n_pad // node_tile
    e_tiles = e_pad // edge_tile

    # Pad: padded edges get dst = n_pad (a sentinel no node id matches, which
    # sorts after every real edge); padded nodes get batch = -1 so pooling
    # ignores them.  (Padded node rows carry harmless finite garbage through
    # the layers; nothing reads them except via clamped gathers whose
    # messages scatter nowhere.)
    x_p = _pad_rows(x, n_pad)
    src = edge_index[0].astype(jnp.int32)
    dst = edge_index[1].astype(jnp.int32)
    pad_e = e_pad - e
    src_p = jnp.pad(src, (0, pad_e), constant_values=0)
    dst_p = jnp.pad(dst, (0, pad_e), constant_values=n_pad)
    ea_p = _pad_rows(edge_attr, e_pad)

    # Sort edges by destination (CSR-lite): per node tile, only edge tiles in
    # [et_first, et_last] can contribute; the kernel skips everything else.
    perm = jnp.argsort(dst_p)
    dst_s = dst_p[perm]
    src_s = src_p[perm]
    ea_s = ea_p[perm].astype(jnp.bfloat16)
    dst_row = dst_s.reshape(1, e_pad)

    bounds = jnp.arange(n_tiles + 1, dtype=jnp.int32) * node_tile
    pos_b = jnp.searchsorted(dst_s, bounds, side="left").astype(jnp.int32)
    lo, hi = pos_b[:-1], pos_b[1:]
    has = hi > lo
    et_first = jnp.where(has, lo // edge_tile, 0).astype(jnp.int32)
    et_last = jnp.where(has, (hi - 1) // edge_tile, -1).astype(jnp.int32)

    dst_gather = jnp.minimum(dst_s, n_pad - 1)   # clamp sentinel for the gather
    batch_row = jnp.pad(batch.astype(jnp.int32), (0, n_pad - n),
                        constant_values=-1).reshape(1, n_pad)

    # h = lin_in(data.x)
    h = pallas_lin_in(x_p, prepped["lin_in_w"], prepped["lin_in_b"], node_tile)

    # h = h + conv(h, edge_index, edge_attr): message MLP + scatter-add +
    # update MLP + residual fused in one Pallas kernel per layer.
    for lp in prepped["layers"]:
        # TODO(synk): move the h[src]/h[dst] endpoint gathers in-kernel
        # (scalar-prefetched indices + DMA gather) to drop these (E, d) HBM
        # round-trips; for now they stay in XLA, but in bf16 (half traffic).
        h_bf = h.astype(jnp.bfloat16)
        h_i = h_bf[dst_gather]                                # (e_pad, d_pad)
        h_j = h_bf[src_s]                                     # (e_pad, d_pad)
        h = pallas_mpnn_layer(et_first, et_last, dst_row, h_i, h_j, ea_s, h,
                              lp["w_stack"], lp["w_msg_e"], lp["rowvec"],
                              node_tile, edge_tile)

    # global_mean_pool + lin_pred fused (counts computed in JAX glue,
    # 1/count applied in the kernel epilogue).
    counts = jnp.zeros((b,), jnp.float32).at[batch].add(1.0)
    inv_counts = jnp.where(counts > 0, 1.0 / jnp.maximum(counts, 1.0), 0.0)
    inv_counts = jnp.pad(inv_counts, (0, b_pad - b)).reshape(b_pad, 1)

    out = pallas_pool_pred(batch_row, h, inv_counts,
                           prepped["lin_pred_w"], prepped["lin_pred_b"],
                           node_tile)                         # (b_pad, 1)
    return out[:b, :].reshape(-1)


# ----------------------------- Driver -----------------------------

if __name__ == "__main__":
    # Small synthetic graph batch: 2 graphs, 16 nodes total, 32 directed edges.
    NUM_LAYERS = 1
    EMB_DIM = 32
    IN_DIM = 11
    EDGE_DIM = 4
    OUT_DIM = 1
    N_NODES = 16
    N_EDGES = 32
    N_GRAPHS = 2

    key = jax.random.PRNGKey(0)
    k_x, k_pos, k_ei, k_ea, k_params = jax.random.split(key, 5)

    x = jax.random.normal(k_x, (N_NODES, IN_DIM), jnp.float32)
    pos = jax.random.normal(k_pos, (N_NODES, 3), jnp.float32)
    edge_index = jax.random.randint(k_ei, (2, N_EDGES), 0, N_NODES, jnp.int32)
    edge_attr = jax.random.normal(k_ea, (N_EDGES, EDGE_DIM), jnp.float32)
    # Nodes 0..7 belong to graph 0, nodes 8..15 belong to graph 1.
    batch = jnp.concatenate([jnp.zeros(8, jnp.int32), jnp.ones(8, jnp.int32)])

    params = init_mpnn_model(k_params, NUM_LAYERS, EMB_DIM, IN_DIM, EDGE_DIM,
                             OUT_DIM)
    # One-time parameter prep (BN folding, splits, padding, bf16) outside jit.
    prepped = prepare_params(params)

    out = mpnn_model_forward(prepped, x, pos, edge_index, edge_attr, batch,
                             num_graphs=N_GRAPHS)
    out = jax.block_until_ready(out)
    assert out.shape == (N_GRAPHS,)
    assert bool(jnp.all(jnp.isfinite(out)))
    print("KERNEL_OK")
</pallas_src>

<mosaic_0001>
module attributes {stable_mosaic.version = 11 : i64} {
  func.func @_lin_in_kernel(%arg0: i32, %arg1: memref<16x11xf32, #tpu.memory_space<vmem>>, %arg2: memref<11x128xbf16, #tpu.memory_space<vmem>>, %arg3: memref<1x128xf32, #tpu.memory_space<vmem>>, %arg4: memref<16x128xf32, #tpu.memory_space<vmem>>) attributes {dimension_semantics = [#tpu.dimension_semantics<parallel>], iteration_bounds = array<i64: 1>, scalar_prefetch = 0 : i64, scratch_operands = 0 : i64, tpu.core_type = #tpu.core_type<tc>, window_params = [{transform_indices = @transform_0, window_bounds = array<i64: 16, 11>}, {pipeline_mode = #tpu.pipeline_mode<synchronous>, transform_indices = @transform_1, window_bounds = array<i64: 11, 128>}, {pipeline_mode = #tpu.pipeline_mode<synchronous>, transform_indices = @transform_2, window_bounds = array<i64: 1, 128>}, {transform_indices = @transform_3, window_bounds = array<i64: 16, 128>}]} {
    %c0 = arith.constant 0 : index
    %c0_0 = arith.constant 0 : index
    %0 = vector.load %arg1[%c0, %c0_0] : memref<16x11xf32, #tpu.memory_space<vmem>>, vector<16x11xf32>
    %1 = arith.truncf %0 : vector<16x11xf32> to vector<16x11xbf16>
    %c0_1 = arith.constant 0 : index
    %c0_2 = arith.constant 0 : index
    %2 = vector.load %arg2[%c0_1, %c0_2] : memref<11x128xbf16, #tpu.memory_space<vmem>>, vector<11x128xbf16>
    %cst = arith.constant dense<0.000000e+00> : vector<16x128xf32>
    %3 = tpu.matmul %1, %2, %cst {dimension_numbers = #tpu.dot_dimension_numbers<[1], [0], [0], [1], [0, 0, 1, 1], [], []>} : vector<16x11xbf16>, vector<11x128xbf16>, vector<16x128xf32> -> vector<16x128xf32>
    %c0_3 = arith.constant 0 : index
    %c0_4 = arith.constant 0 : index
    %4 = vector.load %arg3[%c0_3, %c0_4] : memref<1x128xf32, #tpu.memory_space<vmem>>, vector<1x128xf32>
    %5 = vector.broadcast %4 : vector<1x128xf32> to vector<16x128xf32>
    %6 = arith.addf %3, %5 : vector<16x128xf32>
    %c0_5 = arith.constant 0 : index
    %c0_6 = arith.constant 0 : index
    %7 = vector.load %arg4[%c0_5, %c0_6] : memref<16x128xf32, #tpu.memory_space<vmem>>, vector<16x128xf32>
    tpu.vector_store %arg4[%c0_5, %c0_6], %6 {strides = array<i32>} : memref<16x128xf32, #tpu.memory_space<vmem>>, vector<16x128xf32>,
    return
  }
  func.func @transform_0(%arg0: i32) -> (i32, i32) {
    %c0_i32 = arith.constant 0 : i32
    %c0_i32_0 = arith.constant 0 : i32
    return %arg0, %c0_i32 : i32, i32
  }
  func.func @transform_1(%arg0: i32) -> (i32, i32) {
    %c0_i32 = arith.constant 0 : i32
    %c0_i32_0 = arith.constant 0 : i32
    %c0_i32_1 = arith.constant 0 : i32
    return %c0_i32, %c0_i32_0 : i32, i32
  }
  func.func @transform_2(%arg0: i32) -> (i32, i32) {
    %c0_i32 = arith.constant 0 : i32
    %c0_i32_0 = arith.constant 0 : i32
    %c0_i32_1 = arith.constant 0 : i32
    return %c0_i32, %c0_i32_0 : i32, i32
  }
  func.func @transform_3(%arg0: i32) -> (i32, i32) {
    %c0_i32 = arith.constant 0 : i32
    %c0_i32_0 = arith.constant 0 : i32
    return %arg0, %c0_i32 : i32, i32
  }
}

module attributes {stable_mosaic.version = 11 : i64} {
  func.func @_mpnn_layer_kernel(%arg0: i32, %arg1: i32, %arg2: memref<1xi32, #tpu.memory_space<smem>>, %arg3: memref<1xi32, #tpu.memory_space<smem>>, %arg4: memref<1x128xi32, #tpu.memory_space<vmem>>, %arg5: memref<128x128xbf16, #tpu.memory_space<vmem>>, %arg6: memref<128x128xbf16, #tpu.memory_space<vmem>>, %arg7: memref<128x4xbf16, #tpu.memory_space<vmem>>, %arg8: memref<16x128xf32, #tpu.memory_space<vmem>>, %arg9: memref<6x128x128xbf16, #tpu.memory_space<vmem>>, %arg10: memref<4x128xbf16, #tpu.memory_space<vmem>>, %arg11: memref<8x128xf32, #tpu.memory_space<vmem>>, %arg12: memref<16x128xf32, #tpu.memory_space<vmem>>, %arg13: memref<16x128xf32, #tpu.memory_space<vmem>>) attributes {dimension_semantics = [#tpu.dimension_semantics<parallel>, #tpu.dimension_semantics<arbitrary>], iteration_bounds = array<i64: 1, 1>, scalar_prefetch = 2 : i64, scratch_operands = 1 : i64, tpu.core_type = #tpu.core_type<tc>, window_params = [{transform_indices = @transform_0, window_bounds = array<i64: 1, 128>}, {transform_indices = @transform_1, window_bounds = array<i64: 128, 128>}, {transform_indices = @transform_2, window_bounds = array<i64: 128, 128>}, {transform_indices = @transform_3, window_bounds = array<i64: 128, 4>}, {transform_indices = @transform_4, window_bounds = array<i64: 16, 128>}, {pipeline_mode = #tpu.pipeline_mode<synchronous>, transform_indices = @transform_5, window_bounds = array<i64: 6, 128, 128>}, {pipeline_mode = #tpu.pipeline_mode<synchronous>, transform_indices = @transform_6, window_bounds = array<i64: 4, 128>}, {pipeline_mode = #tpu.pipeline_mode<synchronous>, transform_indices = @transform_7, window_bounds = array<i64: 8, 128>}, {transform_indices = @transform_8, window_bounds = array<i64: 16, 128>}]} {
    %c0_i32 = arith.constant 0 : i32
    %0 = arith.cmpi eq, %arg1, %c0_i32 : i32
    %1 = arith.extui %0 : i1 to i32
    %c0_i32_0 = arith.constant 0 : i32
    %2 = arith.cmpi ne, %1, %c0_i32_0 : i32
    scf.if %2 {
      %cst = arith.constant 0.000000e+00 : f32
      %15 = vector.broadcast %cst : f32 to vector<16x128xf32>
      %c0 = arith.constant 0 : index
      %c0_4 = arith.constant 0 : index
      %16 = vector.load %arg13[%c0, %c0_4] : memref<16x128xf32, #tpu.memory_space<vmem>>, vector<16x128xf32>
      tpu.vector_store %arg13[%c0, %c0_4], %15 {strides = array<i32>} : memref<16x128xf32, #tpu.memory_space<vmem>>, vector<16x128xf32>,
    } else {
    }
    %3 = arith.index_cast %arg0 : i32 to index
    %4 = memref.load %arg2[%3] : memref<1xi32, #tpu.memory_space<smem>>
    %5 = arith.cmpi sge, %arg1, %4 : i32
    %6 = arith.index_cast %arg0 : i32 to index
    %7 = memref.load %arg3[%6] : memref<1xi32, #tpu.memory_space<smem>>
    %8 = arith.cmpi sle, %arg1, %7 : i32
    %9 = arith.andi %5, %8 : i1
    %10 = arith.extui %9 : i1 to i32
    %c0_i32_1 = arith.constant 0 : i32
    %11 = arith.cmpi ne, %10, %c0_i32_1 : i32
    scf.if %11 {
      %c0 = arith.constant 0 : index
      %c0_4 = arith.constant 0 : index
      %15 = vector.load %arg5[%c0, %c0_4] : memref<128x128xbf16, #tpu.memory_space<vmem>>, vector<128x128xbf16>
      %c0_5 = arith.constant 0 : index
      %c0_6 = arith.constant 0 : index
      %c0_7 = arith.constant 0 : index
      %16 = vector.load %arg9[%c0_5, %c0_6, %c0_7] : memref<6x128x128xbf16, #tpu.memory_space<vmem>>, vector<1x128x128xbf16>
      %17 = vector.shape_cast %16 : vector<1x128x128xbf16> to vector<128x128xbf16>
      %cst = arith.constant dense<0.000000e+00> : vector<128x128xf32>
      %18 = tpu.matmul %15, %17, %cst {dimension_numbers = #tpu.dot_dimension_numbers<[1], [0], [0], [1], [0, 0, 1, 1], [], []>} : vector<128x128xbf16>, vector<128x128xbf16>, vector<128x128xf32> -> vector<128x128xf32>
      %c0_8 = arith.constant 0 : index
      %c0_9 = arith.constant 0 : index
      %19 = vector.load %arg6[%c0_8, %c0_9] : memref<128x128xbf16, #tpu.memory_space<vmem>>, vector<128x128xbf16>
      %c1 = arith.constant 1 : index
      %c0_10 = arith.constant 0 : index
      %c0_11 = arith.constant 0 : index
      %20 = vector.load %arg9[%c1, %c0_10, %c0_11] : memref<6x128x128xbf16, #tpu.memory_space<vmem>>, vector<1x128x128xbf16>
      %21 = vector.shape_cast %20 : vector<1x128x128xbf16> to vector<128x128xbf16>
      %cst_12 = arith.constant dense<0.000000e+00> : vector<128x128xf32>
      %22 = tpu.matmul %19, %21, %cst_12 {dimension_numbers = #tpu.dot_dimension_numbers<[1], [0], [0], [1], [0, 0, 1, 1], [], []>} : vector<128x128xbf16>, vector<128x128xbf16>, vector<128x128xf32> -> vector<128x128xf32>
      %23 = arith.addf %18, %22 : vector<128x128xf32>
      %c0_13 = arith.constant 0 : index
      %c0_14 = arith.constant 0 : index
      %24 = vector.load %arg7[%c0_13, %c0_14] : memref<128x4xbf16, #tpu.memory_space<vmem>>, vector<128x4xbf16>
      %c0_15 = arith.constant 0 : index
      %c0_16 = arith.constant 0 : index
      %25 = vector.load %arg10[%c0_15, %c0_16] : memref<4x128xbf16, #tpu.memory_space<vmem>>, vector<4x128xbf16>
      %cst_17 = arith.constant dense<0.000000e+00> : vector<128x128xf32>
      %26 = tpu.matmul %24, %25, %cst_17 {dimension_numbers = #tpu.dot_dimension_numbers<[1], [0], [0], [1], [0, 0, 1, 1], [], []>} : vector<128x4xbf16>, vector<4x128xbf16>, vector<128x128xf32> -> vector<128x128xf32>
      %27 = arith.addf %23, %26 : vector<128x128xf32>
      %c0_18 = arith.constant 0 : index
      %c0_19 = arith.constant 0 : index
      %28 = vector.load %arg11[%c0_18, %c0_19] : memref<8x128xf32, #tpu.memory_space<vmem>>, vector<1x128xf32>
      %29 = vector.broadcast %28 : vector<1x128xf32> to vector<128x128xf32>
      %30 = arith.addf %27, %29 : vector<128x128xf32>
      %cst_20 = arith.constant 0.000000e+00 : f32
      %31 = vector.broadcast %cst_20 : f32 to vector<128x128xf32>
      %32 = arith.maximumf %30, %31 : vector<128x128xf32>
      %33 = arith.truncf %32 : vector<128x128xf32> to vector<128x128xbf16>
      %c2 = arith.constant 2 : index
      %c0_21 = arith.constant 0 : index
      %c0_22 = arith.constant 0 : index
      %34 = vector.load %arg9[%c2, %c0_21, %c0_22] : memref<6x128x128xbf16, #tpu.memory_space<vmem>>, vector<1x128x128xbf16>
      %35 = vector.shape_cast %34 : vector<1x128x128xbf16> to vector<128x128xbf16>
      %cst_23 = arith.constant dense<0.000000e+00> : vector<128x128xf32>
      %36 = tpu.matmul %33, %35, %cst_23 {dimension_numbers = #tpu.dot_dimension_numbers<[1], [0], [0], [1], [0, 0, 1, 1], [], []>} : vector<128x128xbf16>, vector<128x128xbf16>, vector<128x128xf32> -> vector<128x128xf32>
      %c1_24 = arith.constant 1 : index
      %c0_25 = arith.constant 0 : index
      %37 = vector.load %arg11[%c1_24, %c0_25] : memref<8x128xf32, #tpu.memory_space<vmem>>, vector<1x128xf32>
      %38 = vector.broadcast %37 : vector<1x128xf32> to vector<128x128xf32>
      %39 = arith.addf %36, %38 : vector<128x128xf32>
      %cst_26 = arith.constant 0.000000e+00 : f32
      %40 = vector.broadcast %cst_26 : f32 to vector<128x128xf32>
      %41 = arith.maximumf %39, %40 : vector<128x128xf32>
      %c0_27 = arith.constant 0 : index
      %c0_28 = arith.constant 0 : index
      %42 = vector.load %arg4[%c0_27, %c0_28] : memref<1x128xi32, #tpu.memory_space<vmem>>, vector<1x128xi32>
      %c16_i32 = arith.constant 16 : i32
      %43 = arith.muli %arg0, %c16_i32 : i32
      %44 = vector.broadcast %43 : i32 to vector<1x128xi32>
      %45 = arith.subi %42, %44 : vector<1x128xi32>
      %46 = tpu.iota {dimensions = array<i32: 0>} : vector<16x128xi32>
      %47 = vector.broadcast %45 : vector<1x128xi32> to vector<16x128xi32>
      %48 = arith.cmpi eq, %46, %47 : vector<16x128xi32>
      %49 = arith.extui %48 : vector<16x128xi1> to vector<16x128xi32>
      %50 = arith.sitofp %49 : vector<16x128xi32> to vector<16x128xf32>
      %51 = arith.truncf %50 : vector<16x128xf32> to vector<16x128xbf16>
      %c0_29 = arith.constant 0 : index
      %c0_30 = arith.constant 0 : index
      %52 = vector.load %arg13[%c0_29, %c0_30] : memref<16x128xf32, #tpu.memory_space<vmem>>, vector<16x128xf32>
      %53 = arith.truncf %41 : vector<128x128xf32> to vector<128x128xbf16>
      %cst_31 = arith.constant dense<0.000000e+00> : vector<16x128xf32>
      %54 = tpu.matmul %51, %53, %cst_31 {dimension_numbers = #tpu.dot_dimension_numbers<[1], [0], [0], [1], [0, 0, 1, 1], [], []>} : vector<16x128xbf16>, vector<128x128xbf16>, vector<16x128xf32> -> vector<16x128xf32>
      %55 = arith.addf %52, %54 : vector<16x128xf32>
      %c0_32 = arith.constant 0 : index
      %c0_33 = arith.constant 0 : index
      %56 = vector.load %arg13[%c0_32, %c0_33] : memref<16x128xf32, #tpu.memory_space<vmem>>, vector<16x128xf32>
      tpu.vector_store %arg13[%c0_32, %c0_33], %55 {strides = array<i32>} : memref<16x128xf32, #tpu.memory_space<vmem>>, vector<16x128xf32>,
    } else {
    }
    %c0_i32_2 = arith.constant 0 : i32
    %12 = arith.cmpi eq, %arg1, %c0_i32_2 : i32
    %13 = arith.extui %12 : i1 to i32
    %c0_i32_3 = arith.constant 0 : i32
    %14 = arith.cmpi ne, %13, %c0_i32_3 : i32
    scf.if %14 {
      %c0 = arith.constant 0 : index
      %c0_4 = arith.constant 0 : index
      %15 = vector.load %arg8[%c0, %c0_4] : memref<16x128xf32, #tpu.memory_space<vmem>>, vector<16x128xf32>
      %16 = arith.truncf %15 : vector<16x128xf32> to vector<16x128xbf16>
      %c3 = arith.constant 3 : index
      %c0_5 = arith.constant 0 : index
      %c0_6 = arith.constant 0 : index
      %17 = vector.load %arg9[%c3, %c0_5, %c0_6] : memref<6x128x128xbf16, #tpu.memory_space<vmem>>, vector<1x128x128xbf16>
      %18 = vector.shape_cast %17 : vector<1x128x128xbf16> to vector<128x128xbf16>
      %cst = arith.constant dense<0.000000e+00> : vector<16x128xf32>
      %19 = tpu.matmul %16, %18, %cst {dimension_numbers = #tpu.dot_dimension_numbers<[1], [0], [0], [1], [0, 0, 1, 1], [], []>} : vector<16x128xbf16>, vector<128x128xbf16>, vector<16x128xf32> -> vector<16x128xf32>
      %c0_7 = arith.constant 0 : index
      %c0_8 = arith.constant 0 : index
      %20 = vector.load %arg13[%c0_7, %c0_8] : memref<16x128xf32, #tpu.memory_space<vmem>>, vector<16x128xf32>
      %21 = arith.truncf %20 : vector<16x128xf32> to vector<16x128xbf16>
      %c4 = arith.constant 4 : index
      %c0_9 = arith.constant 0 : index
      %c0_10 = arith.constant 0 : index
      %22 = vector.load %arg9[%c4, %c0_9, %c0_10] : memref<6x128x128xbf16, #tpu.memory_space<vmem>>, vector<1x128x128xbf16>
      %23 = vector.shape_cast %22 : vector<1x128x128xbf16> to vector<128x128xbf16>
      %cst_11 = arith.constant dense<0.000000e+00> : vector<16x128xf32>
      %24 = tpu.matmul %21, %23, %cst_11 {dimension_numbers = #tpu.dot_dimension_numbers<[1], [0], [0], [1], [0, 0, 1, 1], [], []>} : vector<16x128xbf16>, vector<128x128xbf16>, vector<16x128xf32> -> vector<16x128xf32>
      %25 = arith.addf %19, %24 : vector<16x128xf32>
      %c2 = arith.constant 2 : index
      %c0_12 = arith.constant 0 : index
      %26 = vector.load %arg11[%c2, %c0_12] : memref<8x128xf32, #tpu.memory_space<vmem>>, vector<1x128xf32>
      %27 = vector.broadcast %26 : vector<1x128xf32> to vector<16x128xf32>
      %28 = arith.addf %25, %27 : vector<16x128xf32>
      %cst_13 = arith.constant 0.000000e+00 : f32
      %29 = vector.broadcast %cst_13 : f32 to vector<16x128xf32>
      %30 = arith.maximumf %28, %29 : vector<16x128xf32>
      %31 = arith.truncf %30 : vector<16x128xf32> to vector<16x128xbf16>
      %c5 = arith.constant 5 : index
      %c0_14 = arith.constant 0 : index
      %c0_15 = arith.constant 0 : index
      %32 = vector.load %arg9[%c5, %c0_14, %c0_15] : memref<6x128x128xbf16, #tpu.memory_space<vmem>>, vector<1x128x128xbf16>
      %33 = vector.shape_cast %32 : vector<1x128x128xbf16> to vector<128x128xbf16>
      %cst_16 = arith.constant dense<0.000000e+00> : vector<16x128xf32>
      %34 = tpu.matmul %31, %33, %cst_16 {dimension_numbers = #tpu.dot_dimension_numbers<[1], [0], [0], [1], [0, 0, 1, 1], [], []>} : vector<16x128xbf16>, vector<128x128xbf16>, vector<16x128xf32> -> vector<16x128xf32>
      %c3_17 = arith.constant 3 : index
      %c0_18 = arith.constant 0 : index
      %35 = vector.load %arg11[%c3_17, %c0_18] : memref<8x128xf32, #tpu.memory_space<vmem>>, vector<1x128xf32>
      %36 = vector.broadcast %35 : vector<1x128xf32> to vector<16x128xf32>
      %37 = arith.addf %34, %36 : vector<16x128xf32>
      %cst_19 = arith.constant 0.000000e+00 : f32
      %38 = vector.broadcast %cst_19 : f32 to vector<16x128xf32>
      %39 = arith.maximumf %37, %38 : vector<16x128xf32>
      %40 = arith.addf %15, %39 : vector<16x128xf32>
      %c0_20 = arith.constant 0 : index
      %c0_21 = arith.constant 0 : index
      %41 = vector.load %arg12[%c0_20, %c0_21] : memref<16x128xf32, #tpu.memory_space<vmem>>, vector<16x128xf32>
      tpu.vector_store %arg12[%c0_20, %c0_21], %40 {strides = array<i32>} : memref<16x128xf32, #tpu.memory_space<vmem>>, vector<16x128xf32>,
    } else {
    }
    return
  }
  func.func @transform_0(%arg0: i32, %arg1: i32, %arg2: memref<1xi32, #tpu.memory_space<smem>>, %arg3: memref<1xi32, #tpu.memory_space<smem>>) -> (i32, i32) {
    %0 = arith.index_cast %arg0 : i32 to index
    %1 = memref.load %arg2[%0] : memref<1xi32, #tpu.memory_space<smem>>
    %2 = arith.index_cast %arg0 : i32 to index
    %3 = memref.load %arg3[%2] : memref<1xi32, #tpu.memory_space<smem>>
    %4 = arith.maxsi %3, %1 : i32
    %5 = arith.maxsi %arg1, %1 : i32
    %6 = arith.minsi %5, %4 : i32
    %c0_i32 = arith.constant 0 : i32
    %c0_i32_0 = arith.constant 0 : i32
    return %c0_i32, %6 : i32, i32
  }
  func.func @transform_1(%arg0: i32, %arg1: i32, %arg2: memref<1xi32, #tpu.memory_space<smem>>, %arg3: memref<1xi32, #tpu.memory_space<smem>>) -> (i32, i32) {
    %0 = arith.index_cast %arg0 : i32 to index
    %1 = memref.load %arg2[%0] : memref<1xi32, #tpu.memory_space<smem>>
    %2 = arith.index_cast %arg0 : i32 to index
    %3 = memref.load %arg3[%2] : memref<1xi32, #tpu.memory_space<smem>>
    %4 = arith.maxsi %3, %1 : i32
    %5 = arith.maxsi %arg1, %1 : i32
    %6 = arith.minsi %5, %4 : i32
    %c0_i32 = arith.constant 0 : i32
    %c0_i32_0 = arith.constant 0 : i32
    return %6, %c0_i32 : i32, i32
  }
  func.func @transform_2(%arg0: i32, %arg1: i32, %arg2: memref<1xi32, #tpu.memory_space<smem>>, %arg3: memref<1xi32, #tpu.memory_space<smem>>) -> (i32, i32) {
    %0 = arith.index_cast %arg0 : i32 to index
    %1 = memref.load %arg2[%0] : memref<1xi32, #tpu.memory_space<smem>>
    %2 = arith.index_cast %arg0 : i32 to index
    %3 = memref.load %arg3[%2] : memref<1xi32, #tpu.memory_space<smem>>
    %4 = arith.maxsi %3, %1 : i32
    %5 = arith.maxsi %arg1, %1 : i32
    %6 = arith.minsi %5, %4 : i32
    %c0_i32 = arith.constant 0 : i32
    %c0_i32_0 = arith.constant 0 : i32
    return %6, %c0_i32 : i32, i32
  }
  func.func @transform_3(%arg0: i32, %arg1: i32, %arg2: memref<1xi32, #tpu.memory_space<smem>>, %arg3: memref<1xi32, #tpu.memory_space<smem>>) -> (i32, i32) {
    %0 = arith.index_cast %arg0 : i32 to index
    %1 = memref.load %arg2[%0] : memref<1xi32, #tpu.memory_space<smem>>
    %2 = arith.index_cast %arg0 : i32 to index
    %3 = memref.load %arg3[%2] : memref<1xi32, #tpu.memory_space<smem>>
    %4 = arith.maxsi %3, %1 : i32
    %5 = arith.maxsi %arg1, %1 : i32
    %6 = arith.minsi %5, %4 : i32
    %c0_i32 = arith.constant 0 : i32
    %c0_i32_0 = arith.constant 0 : i32
    return %6, %c0_i32 : i32, i32
  }
  func.func @transform_4(%arg0: i32, %arg1: i32, %arg2: memref<1xi32, #tpu.memory_space<smem>>, %arg3: memref<1xi32, #tpu.memory_space<smem>>) -> (i32, i32) {
    %c0_i32 = arith.constant 0 : i32
    %c0_i32_0 = arith.constant 0 : i32
    return %arg0, %c0_i32 : i32, i32
  }
  func.func @transform_5(%arg0: i32, %arg1: i32, %arg2: memref<1xi32, #tpu.memory_space<smem>>, %arg3: memref<1xi32, #tpu.memory_space<smem>>) -> (i32, i32, i32) {
    %c0_i32 = arith.constant 0 : i32
    %c0_i32_0 = arith.constant 0 : i32
    %c0_i32_1 = arith.constant 0 : i32
    %c0_i32_2 = arith.constant 0 : i32
    return %c0_i32, %c0_i32_0, %c0_i32_1 : i32, i32, i32
  }
  func.func @transform_6(%arg0: i32, %arg1: i32, %arg2: memref<1xi32, #tpu.memory_space<smem>>, %arg3: memref<1xi32, #tpu.memory_space<smem>>) -> (i32, i32) {
    %c0_i32 = arith.constant 0 : i32
    %c0_i32_0 = arith.constant 0 : i32
    %c0_i32_1 = arith.constant 0 : i32
    return %c0_i32, %c0_i32_0 : i32, i32
  }
  func.func @transform_7(%arg0: i32, %arg1: i32, %arg2: memref<1xi32, #tpu.memory_space<smem>>, %arg3: memref<1xi32, #tpu.memory_space<smem>>) -> (i32, i32) {
    %c0_i32 = arith.constant 0 : i32
    %c0_i32_0 = arith.constant 0 : i32
    %c0_i32_1 = arith.constant 0 : i32
    return %c0_i32, %c0_i32_0 : i32, i32
  }
  func.func @transform_8(%arg0: i32, %arg1: i32, %arg2: memref<1xi32, #tpu.memory_space<smem>>, %arg3: memref<1xi32, #tpu.memory_space<smem>>) -> (i32, i32) {
    %c0_i32 = arith.constant 0 : i32
    %c0_i32_0 = arith.constant 0 : i32
    return %arg0, %c0_i32 : i32, i32
  }
}

module attributes {stable_mosaic.version = 11 : i64} {
  func.func @_pool_pred_kernel(%arg0: i32, %arg1: memref<1x16xi32, #tpu.memory_space<vmem>>, %arg2: memref<16x128xf32, #tpu.memory_space<vmem>>, %arg3: memref<8x1xf32, #tpu.memory_space<vmem>>, %arg4: memref<128x1xbf16, #tpu.memory_space<vmem>>, %arg5: memref<1x1xf32, #tpu.memory_space<vmem>>, %arg6: memref<8x1xf32, #tpu.memory_space<vmem>>, %arg7: memref<8x128xf32, #tpu.memory_space<vmem>>) attributes {dimension_semantics = [#tpu.dimension_semantics<arbitrary>], iteration_bounds = array<i64: 1>, scalar_prefetch = 0 : i64, scratch_operands = 1 : i64, tpu.core_type = #tpu.core_type<tc>, window_params = [{transform_indices = @transform_0, window_bounds = array<i64: 1, 16>}, {transform_indices = @transform_1, window_bounds = array<i64: 16, 128>}, {pipeline_mode = #tpu.pipeline_mode<synchronous>, transform_indices = @transform_2, window_bounds = array<i64: 8, 1>}, {pipeline_mode = #tpu.pipeline_mode<synchronous>, transform_indices = @transform_3, window_bounds = array<i64: 128, 1>}, {pipeline_mode = #tpu.pipeline_mode<synchronous>, transform_indices = @transform_4, window_bounds = array<i64: 1, 1>}, {pipeline_mode = #tpu.pipeline_mode<synchronous>, transform_indices = @transform_5, window_bounds = array<i64: 8, 1>}]} {
    %c0_i32 = arith.constant 0 : i32
    %0 = arith.cmpi eq, %arg0, %c0_i32 : i32
    %1 = arith.extui %0 : i1 to i32
    %c0_i32_0 = arith.constant 0 : i32
    %2 = arith.cmpi ne, %1, %c0_i32_0 : i32
    scf.if %2 {
      %cst_10 = arith.constant 0.000000e+00 : f32
      %17 = vector.broadcast %cst_10 : f32 to vector<8x128xf32>
      %c0_11 = arith.constant 0 : index
      %c0_12 = arith.constant 0 : index
      %18 = vector.load %arg7[%c0_11, %c0_12] : memref<8x128xf32, #tpu.memory_space<vmem>>, vector<8x128xf32>
      tpu.vector_store %arg7[%c0_11, %c0_12], %17 {strides = array<i32>} : memref<8x128xf32, #tpu.memory_space<vmem>>, vector<8x128xf32>,
    } else {
    }
    %3 = tpu.iota {dimensions = array<i32: 0>} : vector<8x16xi32>
    %c0 = arith.constant 0 : index
    %c0_1 = arith.constant 0 : index
    %4 = vector.load %arg1[%c0, %c0_1] : memref<1x16xi32, #tpu.memory_space<vmem>>, vector<1x16xi32>
    %5 = vector.broadcast %4 : vector<1x16xi32> to vector<8x16xi32>
    %6 = arith.cmpi eq, %3, %5 : vector<8x16xi32>
    %7 = arith.extui %6 : vector<8x16xi1> to vector<8x16xi32>
    %8 = arith.sitofp %7 : vector<8x16xi32> to vector<8x16xf32>
    %c0_2 = arith.constant 0 : index
    %c0_3 = arith.constant 0 : index
    %9 = vector.load %arg7[%c0_2, %c0_3] : memref<8x128xf32, #tpu.memory_space<vmem>>, vector<8x128xf32>
    %c0_4 = arith.constant 0 : index
    %c0_5 = arith.constant 0 : index
    %10 = vector.load %arg2[%c0_4, %c0_5] : memref<16x128xf32, #tpu.memory_space<vmem>>, vector<16x128xf32>
    %cst = arith.constant dense<0.000000e+00> : vector<8x128xf32>
    %11 = tpu.matmul %8, %10, %cst {dimension_numbers = #tpu.dot_dimension_numbers<[1], [0], [0], [1], [0, 0, 1, 1], [], []>} : vector<8x16xf32>, vector<16x128xf32>, vector<8x128xf32> -> vector<8x128xf32>
    %12 = arith.addf %9, %11 : vector<8x128xf32>
    %c0_6 = arith.constant 0 : index
    %c0_7 = arith.constant 0 : index
    %13 = vector.load %arg7[%c0_6, %c0_7] : memref<8x128xf32, #tpu.memory_space<vmem>>, vector<8x128xf32>
    tpu.vector_store %arg7[%c0_6, %c0_7], %12 {strides = array<i32>} : memref<8x128xf32, #tpu.memory_space<vmem>>, vector<8x128xf32>,
    %c0_i32_8 = arith.constant 0 : i32
    %14 = arith.cmpi eq, %arg0, %c0_i32_8 : i32
    %15 = arith.extui %14 : i1 to i32
    %c0_i32_9 = arith.constant 0 : i32
    %16 = arith.cmpi ne, %15, %c0_i32_9 : i32
    scf.if %16 {
      %c0_10 = arith.constant 0 : index
      %c0_11 = arith.constant 0 : index
      %17 = vector.load %arg7[%c0_10, %c0_11] : memref<8x128xf32, #tpu.memory_space<vmem>>, vector<8x128xf32>
      %c0_12 = arith.constant 0 : index
      %c0_13 = arith.constant 0 : index
      %18 = vector.load %arg3[%c0_12, %c0_13] : memref<8x1xf32, #tpu.memory_space<vmem>>, vector<8x1xf32>
      %19 = vector.broadcast %18 : vector<8x1xf32> to vector<8x128xf32>
      %20 = arith.mulf %17, %19 : vector<8x128xf32>
      %21 = arith.truncf %20 : vector<8x128xf32> to vector<8x128xbf16>
      %c0_14 = arith.constant 0 : index
      %c0_15 = arith.constant 0 : index
      %22 = vector.load %arg4[%c0_14, %c0_15] : memref<128x1xbf16, #tpu.memory_space<vmem>>, vector<128x1xbf16>
      %cst_16 = arith.constant dense<0.000000e+00> : vector<8x1xf32>
      %23 = tpu.matmul %21, %22, %cst_16 {dimension_numbers = #tpu.dot_dimension_numbers<[1], [0], [0], [1], [0, 0, 1, 1], [], []>} : vector<8x128xbf16>, vector<128x1xbf16>, vector<8x1xf32> -> vector<8x1xf32>
      %c0_17 = arith.constant 0 : index
      %c0_18 = arith.constant 0 : index
      %24 = vector.load %arg5[%c0_17, %c0_18] : memref<1x1xf32, #tpu.memory_space<vmem>>, vector<1x1xf32>
      %25 = vector.broadcast %24 : vector<1x1xf32> to vector<8x1xf32>
      %26 = arith.addf %23, %25 : vector<8x1xf32>
      %c0_19 = arith.constant 0 : index
      %c0_20 = arith.constant 0 : index
      %27 = vector.load %arg6[%c0_19, %c0_20] : memref<8x1xf32, #tpu.memory_space<vmem>>, vector<8x1xf32>
      tpu.vector_store %arg6[%c0_19, %c0_20], %26 {strides = array<i32>} : memref<8x1xf32, #tpu.memory_space<vmem>>, vector<8x1xf32>,
    } else {
    }
    return
  }
  func.func @transform_0(%arg0: i32) -> (i32, i32) {
    %c0_i32 = arith.constant 0 : i32
    %c0_i32_0 = arith.constant 0 : i32
    return %c0_i32, %arg0 : i32, i32
  }
  func.func @transform_1(%arg0: i32) -> (i32, i32) {
    %c0_i32 = arith.constant 0 : i32
    %c0_i32_0 = arith.constant 0 : i32
    return %arg0, %c0_i32 : i32, i32
  }
  func.func @transform_2(%arg0: i32) -> (i32, i32) {
    %c0_i32 = arith.constant 0 : i32
    %c0_i32_0 = arith.constant 0 : i32
    %c0_i32_1 = arith.constant 0 : i32
    return %c0_i32, %c0_i32_0 : i32, i32
  }
  func.func @transform_3(%arg0: i32) -> (i32, i32) {
    %c0_i32 = arith.constant 0 : i32
    %c0_i32_0 = arith.constant 0 : i32
    %c0_i32_1 = arith.constant 0 : i32
    return %c0_i32, %c0_i32_0 : i32, i32
  }
  func.func @transform_4(%arg0: i32) -> (i32, i32) {
    %c0_i32 = arith.constant 0 : i32
    %c0_i32_0 = arith.constant 0 : i32
    %c0_i32_1 = arith.constant 0 : i32
    return %c0_i32, %c0_i32_0 : i32, i32
  }
  func.func @transform_5(%arg0: i32) -> (i32, i32) {
    %c0_i32 = arith.constant 0 : i32
    %c0_i32_0 = arith.constant 0 : i32
    %c0_i32_1 = arith.constant 0 : i32
    return %c0_i32, %c0_i32_0 : i32, i32
  }
}

</mosaic_0001>

<llo_original>
// kernel: custom-call.1
$region0: #{custom-call.1}
  %s0 = inlined_call_operand.vmem [shape: u32[2], index: 0, kind: output, shape index: {}]

// kernel: mpnn_model_forward.3
$region0: #{mpnn_model_forward.3}
  #allocation0 [shape = 'u32[]', space=smem, size = 0x4, offset = 0x4, fixed_abs, tag = 'smem constant byte address 0x4 - core index']
  #allocation1 [shape = 'u32[72,128]{1,0:T(1,128)}', space=vmem, size = 0x9000, scoped, tag = 'internal scratch']
  %s0 = inlined_call_operand.vmem [shape: f32[16,11], index: 0, kind: input, shape index: {}]
  %s1 = inlined_call_operand.vmem [shape: bf16[11,128], index: 1, kind: input, shape index: {}]
  %s2 = inlined_call_operand.vmem [shape: f32[1,128], index: 2, kind: input, shape index: {}]
  %s3 = inlined_call_operand.vmem [shape: f32[16,128], index: 3, kind: output, shape index: {}]
  %s4 = sld [smem:[#allocation0]]
  $region22: #{mpnn_model_forward.3} parent=0
    _
  %s6 = ssub.s32 1, %s4
  %s7 = scalar_select 0, %s6, %s4
  // Predicated region
  $region2: #{mpnn_model_forward.3} parent=0 // pred_check
    _
  $region3: #{mpnn_model_forward.3} parent=0 // pred_check_branch
    %9 = sbr.rel (0) target = $region5
  $region4: #{mpnn_model_forward.3} parent=0 // pred_region
    _
  $region5: #{mpnn_model_forward.3} parent=0 // pred_fallthru
    _
  // Predicated region
  $region6: #{mpnn_model_forward.3} parent=0 // pred_check
    _
  $region7: #{mpnn_model_forward.3} parent=0 // pred_check_branch
    %11 = sbr.rel (0) target = $region9
  $region8: #{mpnn_model_forward.3} parent=0 // pred_region
    _
  $region9: #{mpnn_model_forward.3} parent=0 // pred_fallthru
    _
  // Predicated region
  $region10: #{mpnn_model_forward.3} parent=0 // pred_check
    _
  $region11: #{mpnn_model_forward.3} parent=0 // pred_check_branch
    %13 = sbr.rel (0) target = $region13
  $region12: #{mpnn_model_forward.3} parent=0 // pred_region
    _
  $region13: #{mpnn_model_forward.3} parent=0 // pred_fallthru
    _
  %v15 = vld [vmem:[%s0] sm:$0xff]
  %v16 = vld [vmem:[%s0 + $0x8] sm:$0xff]
  %v17 = vpack.c.bf16 %v16, %v15
  %v18 = vld [vmem:[%s1] sm:$0xf]
  %v19 = vld [vmem:[%s1 + $0x4] sm:$0x3]
  %v20 = vld [vmem:[%s2] sm:$0x1]
  %v22 = vperm.slane %v20, 0
  %v26 = vunpack.c.l.b16 %v18
  %v27 = vunpack.c.l.b16 %v19
  %v28 = vpack.c.b16 %v27, %v26
  %vm29 = vcmask 89088
  %v31 = vsel %vm29, %v17, 0
  %vm33 = vcmask 1044480
  %vm34 = vcmask 1045504
  %v35 = vsel %vm33, 4294967295, 65535
  %v36 = vsel %vm34, %v35, 0
  %v38 = vand.u32 %v28, %v36
  %40 = vmatpush.bf16.msra.mxu0 0
  %41 = vmatpush.bf16.msra.mxu0 0
  %42 = vmatpush.bf16.msra.mxu0 0
  %43 = vmatpush.bf16.msra.mxu0 0
  %44 = vmatpush.bf16.msra.mxu0 0
  %45 = vmatpush.bf16.msra.mxu0 0
  %46 = vmatpush.bf16.msra.mxu0 0
  %47 = vmatpush.bf16.msra.mxu0 %v38
  %48 = vmatmul.bf16.gmra.mxu0 %v31
  %v49 = vpop.f32.mrf.mxu0
  %v50 = vadd.f32 %v22, %v49
  %v51 = vpop.f32.mrf.mxu0
  %v52 = vadd.f32 %v22, %v51
  %53 = vdwg.mxu0
  %54 = vst [vmem:[%s3] sm:$0xff] %v50
  %55 = vst [vmem:[%s3 + $0x8] sm:$0xff] %v52
  // Predicated region
  $region14: #{mpnn_model_forward.3} parent=0 // pred_check
    _
  $region15: #{mpnn_model_forward.3} parent=0 // pred_check_branch
    %57 = sbr.rel (0) target = $region17
  $region16: #{mpnn_model_forward.3} parent=0 // pred_region
    _
  $region17: #{mpnn_model_forward.3} parent=0 // pred_fallthru
    _
  // Predicated region
  $region18: #{mpnn_model_forward.3} parent=0 // pred_check
    _
  $region19: #{mpnn_model_forward.3} parent=0 // pred_check_branch
    %59 = sbr.rel (0) target = $region21
  $region20: #{mpnn_model_forward.3} parent=0 // pred_region
    _
  $region21: #{mpnn_model_forward.3} parent=0 // pred_fallthru
    _

// kernel: mpnn_model_forward.5
$region0: #{mpnn_model_forward.5}
  #allocation0 [shape = 'u32[]', space=smem, size = 0x4, offset = 0x4, fixed_abs, tag = 'smem constant byte address 0x4 - core index']
  #allocation1 [shape = 'u32[72,128]{1,0:T(1,128)}', space=vmem, size = 0x9000, scoped, tag = 'internal scratch']
  #allocation2 [shape = 'f32[8,128]{1,0:T(8,128)}', space=vmem, size = 0x1000, scoped, tag = 'scratch operand']
  #allocation3 [shape = 'f32[1,1]{1,0:T(1,128)S(1)}', space=vmem, size = 0x200, scoped, tag = 'scoped memory for mpnn_model_forward.5']
  %s0 = inlined_call_operand.vmem [shape: s32[1,16], index: 0, kind: input, shape index: {}]
  %s1 = inlined_call_operand.vmem [shape: f32[16,128], index: 1, kind: input, shape index: {}]
  %s2 = inlined_call_operand.vmem [shape: f32[8,1], index: 2, kind: input, shape index: {}]
  %s3 = inlined_call_operand.vmem [shape: bf16[128,1], index: 3, kind: input, shape index: {}]
  %s4 = inlined_call_operand.<no memory space> [shape: f32[1,1], index: 4, kind: input, shape index: {}]
  %s5 = inlined_call_operand.vmem [shape: f32[8,1], index: 5, kind: output, shape index: {}]
  %s6 = sld [smem:[#allocation0]]
  $region38: #{mpnn_model_forward.5} parent=0
    _
  %s8 = ssub.s32 1, %s6
  %s9 = scalar_select 0, %s8, %s6
  %v10 = vstv %s4
  %11 = vst [vmem:[#allocation3] sm:$0x1] %v10
  // Predicated region
  $region2: #{mpnn_model_forward.5} parent=0 // pred_check
    _
  $region3: #{mpnn_model_forward.5} parent=0 // pred_check_branch
    %13 = sbr.rel (0) target = $region5
  $region4: #{mpnn_model_forward.5} parent=0 // pred_region
    _
  $region5: #{mpnn_model_forward.5} parent=0 // pred_fallthru
    _
  // Predicated region
  $region6: #{mpnn_model_forward.5} parent=0 // pred_check
    _
  $region7: #{mpnn_model_forward.5} parent=0 // pred_check_branch
    %15 = sbr.rel (0) target = $region9
  $region8: #{mpnn_model_forward.5} parent=0 // pred_region
    _
  $region9: #{mpnn_model_forward.5} parent=0 // pred_fallthru
    _
  // Predicated region
  $region10: #{mpnn_model_forward.5} parent=0 // pred_check
    _
  $region11: #{mpnn_model_forward.5} parent=0 // pred_check_branch
    %17 = sbr.rel (0) target = $region13
  $region12: #{mpnn_model_forward.5} parent=0 // pred_region
    _
  $region13: #{mpnn_model_forward.5} parent=0 // pred_fallthru
    _
  // Predicated region
  $region14: #{mpnn_model_forward.5} parent=0 // pred_check
    _
  $region15: #{mpnn_model_forward.5} parent=0 // pred_check_branch
    %19 = sbr.rel (0) target = $region17
  $region16: #{mpnn_model_forward.5} parent=0 // pred_region
    _
  $region17: #{mpnn_model_forward.5} parent=0 // pred_fallthru
    _
  // Predicated region
  $region18: #{mpnn_model_forward.5} parent=0 // pred_check
    _
  $region19: #{mpnn_model_forward.5} parent=0 // pred_check_branch
    %21 = sbr.rel (0) target = $region21
  $region20: #{mpnn_model_forward.5} parent=0 // pred_region
    _
  $region21: #{mpnn_model_forward.5} parent=0 // pred_fallthru
    _
  %p22 = scmp.eq.s32.totalorder 0, 0
  // Predicated region
  $region22: #{mpnn_model_forward.5} parent=0 // pred_check
    %p23 = pneg %p22
  $region23: #{mpnn_model_forward.5} parent=0 // pred_check_branch
    %25 = sbr.rel (%p23) target = $region25
  $region24: #{mpnn_model_forward.5} parent=0 // pred_region
    %26 = vst [vmem:[#allocation2] sm:$0xff] 0.0
  $region25: #{mpnn_model_forward.5} parent=0 // pred_fallthru
    _
  %v27 = vlaneseq
  %v28 = vshrl.u32 %v27, 7
  %v29 = vld [vmem:[%s0] sm:$0x1]
  %v30 = vperm.slane %v29, 0
  %vm31 = vcmp.eq.s32.totalorder %v28, %v30
  %v32 = vsel %vm31, 1, 0
  %v33 = vcvt.s32.f32 %v32
  %v34 = vld [vmem:[#allocation2] sm:$0xff]
  %v35 = vld [vmem:[%s1] sm:$0xff]
  %v36 = vld [vmem:[%s1 + $0x8] sm:$0xff]
  %vm37 = vcmask 130048
  %v39 = vsel %vm37, %v33, 0
  %41 = vmatpush.msra.mxu0 0.0
  %42 = vmatpush.msra.mxu0 0.0
  %43 = vmatpush.msra.mxu0 0.0
  %44 = vmatpush.msra.mxu0 0.0
  %45 = vmatpush.msra.mxu0 0.0
  %46 = vmatpush.msra.mxu0 0.0
  %47 = vmatpush.msra.mxu0 0.0
  %48 = vmatpush.msra.mxu0 0.0
  %49 = vmatpush.msra.mxu0 0.0
  %50 = vmatpush.msra.mxu0 0.0
  %51 = vmatpush.msra.mxu0 0.0
  %52 = vmatpush.msra.mxu0 0.0
  %53 = vmatpush.msra.mxu0 0.0
  %54 = vmatpush.msra.mxu0 0.0
  %55 = vmatpush.msra.mxu0 %v36
  %56 = vmatpush.msra.mxu0 %v35
  %57 = vmatmul.f32.gmra.mxu0 %v39
  %v58 = vpop.f32.mrf.mxu0
  %v59 = vadd.f32 0.0, %v58
  %60 = vdwg.mxu0
  %v61 = vadd.f32 %v34, %v59
  %62 = vst [vmem:[#allocation2] sm:$0xff] %v61
  // Predicated region
  $region26: #{mpnn_model_forward.5} parent=0 // pred_check
    %p63 = pneg %p22
  $region27: #{mpnn_model_forward.5} parent=0 // pred_check_branch
    %65 = sbr.rel (%p63) target = $region29
  $region28: #{mpnn_model_forward.5} parent=0 // pred_region
    %v66 = vld [vmem:[#allocation2] sm:$0xff]
    %v67 = vld [vmem:[%s2] sm:$0xff]
    %69 = vset.pattern.permute.xlu0 0
    %70 = vperm.xlu0 %69, %v67
    %v71 = vpop.permute.xlu0 %70
    %v73 = vmul.f32 %v66, %v71
    %v74 = vpack.c.bf16 %v73, %v73
    %v75 = vld [vmem:[%s3] sm:$0xf]
    %v76 = vld [vmem:[%s3 + $0x4] sm:$0xf]
    %v77 = vld [vmem:[%s3 + $0x8] sm:$0xf]
    %v78 = vld [vmem:[%s3 + $0xc] sm:$0xf]
    %v79 = vld [vmem:[%s3 + $0x10] sm:$0xf]
    %v80 = vld [vmem:[%s3 + $0x14] sm:$0xf]
    %v81 = vld [vmem:[%s3 + $0x18] sm:$0xf]
    %v82 = vld [vmem:[%s3 + $0x1c] sm:$0xf]
    %v83 = vld [vmem:[%s3 + $0x20] sm:$0xf]
    %v84 = vld [vmem:[%s3 + $0x24] sm:$0xf]
    %v85 = vld [vmem:[%s3 + $0x28] sm:$0xf]
    %v86 = vld [vmem:[%s3 + $0x2c] sm:$0xf]
    %v87 = vld [vmem:[%s3 + $0x30] sm:$0xf]
    %v88 = vld [vmem:[%s3 + $0x34] sm:$0xf]
    %v89 = vld [vmem:[%s3 + $0x38] sm:$0xf]
    %v90 = vld [vmem:[%s3 + $0x3c] sm:$0xf]
    %v91 = vld [vmem:[#allocation3] sm:$0x1]
    %v93 = vperm.slane %v91, 0
    %v111 = vunpack.c.l.b16 %v75
    %v112 = vunpack.c.l.b16 %v76
    %v113 = vunpack.c.l.b16 %v77
    %v114 = vunpack.c.l.b16 %v78
    %v115 = vunpack.c.l.b16 %v79
    %v116 = vunpack.c.l.b16 %v80
    %v117 = vunpack.c.l.b16 %v81
    %v118 = vunpack.c.l.b16 %v82
    %v119 = vunpack.c.l.b16 %v83
    %v120 = vunpack.c.l.b16 %v84
    %v121 = vunpack.c.l.b16 %v85
    %v122 = vunpack.c.l.b16 %v86
    %v123 = vunpack.c.l.b16 %v87
    %v124 = vunpack.c.l.b16 %v88
    %v125 = vunpack.c.l.b16 %v89
    %v126 = vunpack.c.l.b16 %v90
    %v127 = vpack.c.b16 %v112, %v111
    %v128 = vpack.c.b16 %v114, %v113
    %v129 = vpack.c.b16 %v116, %v115
    %v130 = vpack.c.b16 %v118, %v117
    %v131 = vpack.c.b16 %v120, %v119
    %v132 = vpack.c.b16 %v122, %v121
    %v133 = vpack.c.b16 %v124, %v123
    %v134 = vpack.c.b16 %v126, %v125
    %143 = vmatpush.bf16.msra.mxu0 %v134
    %144 = vmatpush.bf16.msra.mxu0 %v133
    %145 = vmatpush.bf16.msra.mxu0 %v132
    %146 = vmatpush.bf16.msra.mxu0 %v131
    %147 = vmatpush.bf16.msra.mxu0 %v130
    %148 = vmatpush.bf16.msra.mxu0 %v129
    %149 = vmatpush.bf16.msra.mxu0 %v128
    %150 = vmatpush.bf16.msra.mxu0 %v127
    %151 = vmatmul.bf16.gmra.mxu0 %v74
    %v152 = vpop.f32.mrf.mxu0
    %v153 = vadd.f32 %v93, %v152
    %v154 = vpop.f32.mrf.mxu0
    %155 = vdwg.mxu0
    %vm156 = vcmask 7168
    %157 = vst.msk [vmem:[%s5] sm:$0xff] %vm156, %v153
  $region29: #{mpnn_model_forward.5} parent=0 // pred_fallthru
    _
  // Predicated region
  $region30: #{mpnn_model_forward.5} parent=0 // pred_check
    _
  $region31: #{mpnn_model_forward.5} parent=0 // pred_check_branch
    %159 = sbr.rel (0) target = $region33
  $region32: #{mpnn_model_forward.5} parent=0 // pred_region
    _
  $region33: #{mpnn_model_forward.5} parent=0 // pred_fallthru
    _
  // Predicated region
  $region34: #{mpnn_model_forward.5} parent=0 // pred_check
    _
  $region35: #{mpnn_model_forward.5} parent=0 // pred_check_branch
    %161 = sbr.rel (0) target = $region37
  $region36: #{mpnn_model_forward.5} parent=0 // pred_region
    _
  $region37: #{mpnn_model_forward.5} parent=0 // pred_fallthru
    _

// kernel: mpnn_model_forward.4
$region0: #{mpnn_model_forward.4}
  #allocation0 [shape = 'u32[]', space=smem, size = 0x4, offset = 0x4, fixed_abs, tag = 'smem constant byte address 0x4 - core index']
  #allocation1 [shape = 'u32[72,128]{1,0:T(1,128)}', space=vmem, size = 0x9000, scoped, tag = 'internal scratch']
  #allocation2 [shape = 'f32[16,128]{1,0:T(8,128)}', space=vmem, size = 0x2000, scoped, tag = 'scratch operand']
  #allocation3 [shape = 's32[1]{0}', space=sflag, size = 0x4, scoped, tag = 'scoped memory for mpnn_model_forward.4']
  #allocation4 [shape = 's32[1]{0:T(128)S(6)}', space=smem, size = 0x200, scoped, tag = 'prefetched SMEM operand 0']
  #allocation5 [shape = 's32[1]{0:T(128)S(6)}', space=smem, size = 0x200, scoped, tag = 'prefetched SMEM operand 1']
  %s0 = inlined_call_operand.<no memory space> [shape: s32[1], index: 0, kind: input, shape index: {}]
  %s1 = inlined_call_operand.<no memory space> [shape: s32[1], index: 1, kind: input, shape index: {}]
  %s2 = inlined_call_operand.vmem [shape: s32[1,128], index: 2, kind: input, shape index: {}]
  %s3 = inlined_call_operand.vmem [shape: bf16[128,128], index: 3, kind: input, shape index: {}]
  %s4 = inlined_call_operand.vmem [shape: bf16[128,128], index: 4, kind: input, shape index: {}]
  %s5 = inlined_call_operand.vmem [shape: bf16[128,4], index: 5, kind: input, shape index: {}]
  %s6 = inlined_call_operand.vmem [shape: f32[16,128], index: 6, kind: input, shape index: {}]
  %s7 = inlined_call_operand.vmem [shape: bf16[6,128,128], index: 7, kind: input, shape index: {}]
  %s8 = inlined_call_operand.vmem [shape: bf16[4,128], index: 8, kind: input, shape index: {}]
  %s9 = inlined_call_operand.vmem [shape: f32[8,128], index: 9, kind: input, shape index: {}]
  %s10 = inlined_call_operand.vmem [shape: f32[16,128], index: 10, kind: output, shape index: {}]
  %s11 = sld [smem:[#allocation0]]
  $region54: #{mpnn_model_forward.4} parent=0
    _
  %s13 = ssub.s32 1, %s11
  %s14 = scalar_select 0, %s13, %s11
  %15 = sst [smem:[#allocation4]] %s0
  %16 = sst [smem:[#allocation5]] %s1
  // Predicated region
  $region2: #{mpnn_model_forward.4} parent=0 // pred_check
    _
  $region3: #{mpnn_model_forward.4} parent=0 // pred_check_branch
    %18 = sbr.rel (0) target = $region5
  $region4: #{mpnn_model_forward.4} parent=0 // pred_region
    %s19 = sld [smem:[#allocation4]]
    %s20 = sld [smem:[#allocation5]]
    %p21 = scmp.gt.s32.totalorder %s20, %s19
    %s22 = scalar_select %p21, %s20, %s19
    %p23 = scmp.gt.s32.totalorder 0, %s19
    %s24 = scalar_select %p23, 0, %s19
    %p25 = scmp.lt.s32.totalorder %s24, %s22
    %s26 = scalar_select %p25, %s24, %s22
    %p27 = scmp.lt.s32.totalorder %s26, 0
    %s28 = scalar_select %p27, %s26, 0
    %s29 = scalar_lea.vmem %s2, %s28
    %s30 = sld [smem:[#allocation4]]
    %s31 = sld [smem:[#allocation5]]
    %p32 = scmp.gt.s32.totalorder %s31, %s30
    %s33 = scalar_select %p32, %s31, %s30
    %p34 = scmp.gt.s32.totalorder 0, %s30
    %s35 = scalar_select %p34, 0, %s30
    %p36 = scmp.lt.s32.totalorder %s35, %s33
    %s37 = scalar_select %p36, %s35, %s33
  $region5: #{mpnn_model_forward.4} parent=0 // pred_fallthru
    _
  // Predicated region
  $region6: #{mpnn_model_forward.4} parent=0 // pred_check
    _
  $region7: #{mpnn_model_forward.4} parent=0 // pred_check_branch
    %39 = sbr.rel (0) target = $region9
  $region8: #{mpnn_model_forward.4} parent=0 // pred_region
    %s40 = sld [smem:[#allocation4]]
    %s41 = sld [smem:[#allocation5]]
    %p42 = scmp.gt.s32.totalorder %s41, %s40
    %s43 = scalar_select %p42, %s41, %s40
    %p44 = scmp.gt.s32.totalorder 0, %s40
    %s45 = scalar_select %p44, 0, %s40
    %p46 = scmp.lt.s32.totalorder %s45, %s43
    %s47 = scalar_select %p46, %s45, %s43
    %s48 = smul.u32 16, %s47
    %p49 = scmp.lt.s32.totalorder %s48, 15
    %s50 = scalar_select %p49, %s48, 15
    %s51 = smul.addr %s50, 4
    %s52 = scalar_lea.vmem %s3, %s51
    %s53 = sld [smem:[#allocation4]]
    %s54 = sld [smem:[#allocation5]]
    %p55 = scmp.gt.s32.totalorder %s54, %s53
    %s56 = scalar_select %p55, %s54, %s53
    %p57 = scmp.gt.s32.totalorder 0, %s53
    %s58 = scalar_select %p57, 0, %s53
    %p59 = scmp.lt.s32.totalorder %s58, %s56
    %s60 = scalar_select %p59, %s58, %s56
    %s61 = smul.u32 16, %s60
  $region9: #{mpnn_model_forward.4} parent=0 // pred_fallthru
    _
  // Predicated region
  $region10: #{mpnn_model_forward.4} parent=0 // pred_check
    _
  $region11: #{mpnn_model_forward.4} parent=0 // pred_check_branch
    %63 = sbr.rel (0) target = $region13
  $region12: #{mpnn_model_forward.4} parent=0 // pred_region
    %s64 = sld [smem:[#allocation4]]
    %s65 = sld [smem:[#allocation5]]
    %p66 = scmp.gt.s32.totalorder %s65, %s64
    %s67 = scalar_select %p66, %s65, %s64
    %p68 = scmp.gt.s32.totalorder 0, %s64
    %s69 = scalar_select %p68, 0, %s64
    %p70 = scmp.lt.s32.totalorder %s69, %s67
    %s71 = scalar_select %p70, %s69, %s67
    %s72 = smul.u32 16, %s71
    %p73 = scmp.lt.s32.totalorder %s72, 15
    %s74 = scalar_select %p73, %s72, 15
    %s75 = smul.addr %s74, 4
    %s76 = scalar_lea.vmem %s4, %s75
    %s77 = sld [smem:[#allocation4]]
    %s78 = sld [smem:[#allocation5]]
    %p79 = scmp.gt.s32.totalorder %s78, %s77
    %s80 = scalar_select %p79, %s78, %s77
    %p81 = scmp.gt.s32.totalorder 0, %s77
    %s82 = scalar_select %p81, 0, %s77
    %p83 = scmp.lt.s32.totalorder %s82, %s80
    %s84 = scalar_select %p83, %s82, %s80
    %s85 = smul.u32 16, %s84
  $region13: #{mpnn_model_forward.4} parent=0 // pred_fallthru
    _
  // Predicated region
  $region14: #{mpnn_model_forward.4} parent=0 // pred_check
    _
  $region15: #{mpnn_model_forward.4} parent=0 // pred_check_branch
    %87 = sbr.rel (0) target = $region17
  $region16: #{mpnn_model_forward.4} parent=0 // pred_region
    %s88 = sld [smem:[#allocation4]]
    %s89 = sld [smem:[#allocation5]]
    %p90 = scmp.gt.s32.totalorder %s89, %s88
    %s91 = scalar_select %p90, %s89, %s88
    %p92 = scmp.gt.s32.totalorder 0, %s88
    %s93 = scalar_select %p92, 0, %s88
    %p94 = scmp.lt.s32.totalorder %s93, %s91
    %s95 = scalar_select %p94, %s93, %s91
    %s96 = smul.u32 16, %s95
    %p97 = scmp.lt.s32.totalorder %s96, 15
    %s98 = scalar_select %p97, %s96, 15
    %s99 = smul.addr %s98, 4
    %s100 = scalar_lea.vmem %s5, %s99
    %s101 = sld [smem:[#allocation4]]
    %s102 = sld [smem:[#allocation5]]
    %p103 = scmp.gt.s32.totalorder %s102, %s101
    %s104 = scalar_select %p103, %s102, %s101
    %p105 = scmp.gt.s32.totalorder 0, %s101
    %s106 = scalar_select %p105, 0, %s101
    %p107 = scmp.lt.s32.totalorder %s106, %s104
    %s108 = scalar_select %p107, %s106, %s104
    %s109 = smul.u32 16, %s108
  $region17: #{mpnn_model_forward.4} parent=0 // pred_fallthru
    _
  // Predicated region
  $region18: #{mpnn_model_forward.4} parent=0 // pred_check
    _
  $region19: #{mpnn_model_forward.4} parent=0 // pred_check_branch
    %111 = sbr.rel (0) target = $region21
  $region20: #{mpnn_model_forward.4} parent=0 // pred_region
    _
  $region21: #{mpnn_model_forward.4} parent=0 // pred_fallthru
    _
  // Predicated region
  $region22: #{mpnn_model_forward.4} parent=0 // pred_check
    _
  $region23: #{mpnn_model_forward.4} parent=0 // pred_check_branch
    %113 = sbr.rel (0) target = $region25
  $region24: #{mpnn_model_forward.4} parent=0 // pred_region
    _
  $region25: #{mpnn_model_forward.4} parent=0 // pred_fallthru
    _
  // Predicated region
  $region26: #{mpnn_model_forward.4} parent=0 // pred_check
    _
  $region27: #{mpnn_model_forward.4} parent=0 // pred_check_branch
    %115 = sbr.rel (0) target = $region29
  $region28: #{mpnn_model_forward.4} parent=0 // pred_region
    _
  $region29: #{mpnn_model_forward.4} parent=0 // pred_fallthru
    _
  // Predicated region
  $region30: #{mpnn_model_forward.4} parent=0 // pred_check
    _
  $region31: #{mpnn_model_forward.4} parent=0 // pred_check_branch
    %117 = sbr.rel (0) target = $region33
  $region32: #{mpnn_model_forward.4} parent=0 // pred_region
    _
  $region33: #{mpnn_model_forward.4} parent=0 // pred_fallthru
    _
  %s118 = sld [smem:[#allocation4]]
  %s119 = sld [smem:[#allocation5]]
  %p120 = scmp.gt.s32.totalorder %s119, %s118
  %s121 = scalar_select %p120, %s119, %s118
  %p122 = scmp.gt.s32.totalorder 0, %s118
  %s123 = scalar_select %p122, 0, %s118
  %p124 = scmp.lt.s32.totalorder %s123, %s121
  %s125 = scalar_select %p124, %s123, %s121
  %p126 = scmp.lt.s32.totalorder %s125, 0
  %s127 = scalar_select %p126, %s125, 0
  %s128 = scalar_lea.vmem %s2, %s127
  %s129 = sld [smem:[#allocation4]]
  %s130 = sld [smem:[#allocation5]]
  %p131 = scmp.gt.s32.totalorder %s130, %s129
  %s132 = scalar_select %p131, %s130, %s129
  %p133 = scmp.gt.s32.totalorder 0, %s129
  %s134 = scalar_select %p133, 0, %s129
  %p135 = scmp.lt.s32.totalorder %s134, %s132
  %s136 = scalar_select %p135, %s134, %s132
  %s137 = smul.u32 16, %s136
  %p138 = scmp.lt.s32.totalorder %s137, 15
  %s139 = scalar_select %p138, %s137, 15
  %s140 = smul.addr %s139, 4
  %s141 = scalar_lea.vmem %s3, %s140
  %s142 = sld [smem:[#allocation4]]
  %s143 = sld [smem:[#allocation5]]
  %p144 = scmp.gt.s32.totalorder %s143, %s142
  %s145 = scalar_select %p144, %s143, %s142
  %p146 = scmp.gt.s32.totalorder 0, %s142
  %s147 = scalar_select %p146, 0, %s142
  %p148 = scmp.lt.s32.totalorder %s147, %s145
  %s149 = scalar_select %p148, %s147, %s145
  %s150 = smul.u32 16, %s149
  %p151 = scmp.lt.s32.totalorder %s150, 15
  %s152 = scalar_select %p151, %s150, 15
  %s153 = smul.addr %s152, 4
  %s154 = scalar_lea.vmem %s4, %s153
  %s155 = sld [smem:[#allocation4]]
  %s156 = sld [smem:[#allocation5]]
  %p157 = scmp.gt.s32.totalorder %s156, %s155
  %s158 = scalar_select %p157, %s156, %s155
  %p159 = scmp.gt.s32.totalorder 0, %s155
  %s160 = scalar_select %p159, 0, %s155
  %p161 = scmp.lt.s32.totalorder %s160, %s158
  %s162 = scalar_select %p161, %s160, %s158
  %s163 = smul.u32 16, %s162
  %p164 = scmp.lt.s32.totalorder %s163, 15
  %s165 = scalar_select %p164, %s163, 15
  %s166 = smul.addr %s165, 4
  %s167 = scalar_lea.vmem %s5, %s166
  %s168 = sld [smem:[#allocation4]]
  %s169 = sld [smem:[#allocation5]]
  %p170 = scmp.gt.s32.totalorder %s169, %s168
  %s171 = scalar_select %p170, %s169, %s168
  %p172 = scmp.gt.s32.totalorder 0, %s168
  %s173 = scalar_select %p172, 0, %s168
  %p174 = scmp.lt.s32.totalorder %s173, %s171
  %s175 = scalar_select %p174, %s173, %s171
  %p176 = scmp.lt.s32.totalorder %s175, 0
  %s177 = scalar_select %p176, %s175, 0
  %s178 = scalar_lea.vmem %s2, %s177
  %s179 = sld [smem:[#allocation4]]
  %s180 = sld [smem:[#allocation5]]
  %p181 = scmp.gt.s32.totalorder %s180, %s179
  %s182 = scalar_select %p181, %s180, %s179
  %p183 = scmp.gt.s32.totalorder 0, %s179
  %s184 = scalar_select %p183, 0, %s179
  %p185 = scmp.lt.s32.totalorder %s184, %s182
  %s186 = scalar_select %p185, %s184, %s182
  %s187 = sld [smem:[#allocation4]]
  %s188 = sld [smem:[#allocation5]]
  %p189 = scmp.gt.s32.totalorder %s188, %s187
  %s190 = scalar_select %p189, %s188, %s187
  %p191 = scmp.gt.s32.totalorder 0, %s187
  %s192 = scalar_select %p191, 0, %s187
  %p193 = scmp.lt.s32.totalorder %s192, %s190
  %s194 = scalar_select %p193, %s192, %s190
  %s195 = smul.u32 16, %s194
  %p196 = scmp.lt.s32.totalorder %s195, 15
  %s197 = scalar_select %p196, %s195, 15
  %s198 = smul.addr %s197, 4
  %s199 = scalar_lea.vmem %s3, %s198
  %s200 = sld [smem:[#allocation4]]
  %s201 = sld [smem:[#allocation5]]
  %p202 = scmp.gt.s32.totalorder %s201, %s200
  %s203 = scalar_select %p202, %s201, %s200
  %p204 = scmp.gt.s32.totalorder 0, %s200
  %s205 = scalar_select %p204, 0, %s200
  %p206 = scmp.lt.s32.totalorder %s205, %s203
  %s207 = scalar_select %p206, %s205, %s203
  %s208 = smul.u32 16, %s207
  %s209 = sld [smem:[#allocation4]]
  %s210 = sld [smem:[#allocation5]]
  %p211 = scmp.gt.s32.totalorder %s210, %s209
  %s212 = scalar_select %p211, %s210, %s209
  %p213 = scmp.gt.s32.totalorder 0, %s209
  %s214 = scalar_select %p213, 0, %s209
  %p215 = scmp.lt.s32.totalorder %s214, %s212
  %s216 = scalar_select %p215, %s214, %s212
  %s217 = smul.u32 16, %s216
  %p218 = scmp.lt.s32.totalorder %s217, 15
  %s219 = scalar_select %p218, %s217, 15
  %s220 = smul.addr %s219, 4
  %s221 = scalar_lea.vmem %s4, %s220
  %s222 = sld [smem:[#allocation4]]
  %s223 = sld [smem:[#allocation5]]
  %p224 = scmp.gt.s32.totalorder %s223, %s222
  %s225 = scalar_select %p224, %s223, %s222
  %p226 = scmp.gt.s32.totalorder 0, %s222
  %s227 = scalar_select %p226, 0, %s222
  %p228 = scmp.lt.s32.totalorder %s227, %s225
  %s229 = scalar_select %p228, %s227, %s225
  %s230 = smul.u32 16, %s229
  %s231 = sld [smem:[#allocation4]]
  %s232 = sld [smem:[#allocation5]]
  %p233 = scmp.gt.s32.totalorder %s232, %s231
  %s234 = scalar_select %p233, %s232, %s231
  %p235 = scmp.gt.s32.totalorder 0, %s231
  %s236 = scalar_select %p235, 0, %s231
  %p237 = scmp.lt.s32.totalorder %s236, %s234
  %s238 = scalar_select %p237, %s236, %s234
  %s239 = smul.u32 16, %s238
  %p240 = scmp.lt.s32.totalorder %s239, 15
  %s241 = scalar_select %p240, %s239, 15
  %s242 = smul.addr %s241, 4
  %s243 = scalar_lea.vmem %s5, %s242
  %s244 = sld [smem:[#allocation4]]
  %s245 = sld [smem:[#allocation5]]
  %p246 = scmp.gt.s32.totalorder %s245, %s244
  %s247 = scalar_select %p246, %s245, %s244
  %p248 = scmp.gt.s32.totalorder 0, %s244
  %s249 = scalar_select %p248, 0, %s244
  %p250 = scmp.lt.s32.totalorder %s249, %s247
  %s251 = scalar_select %p250, %s249, %s247
  %s252 = smul.u32 16, %s251
  %p254 = scmp.eq.s32.totalorder 0, 0
  // Predicated region
  $region34: #{mpnn_model_forward.4} parent=0 // pred_check
    %p255 = pneg %p254
  $region35: #{mpnn_model_forward.4} parent=0 // pred_check_branch
    %257 = sbr.rel (%p255) target = $region37
  $region36: #{mpnn_model_forward.4} parent=0 // pred_region
    %258 = vst [vmem:[#allocation2] sm:$0xff] 0.0
    %259 = vst [vmem:[#allocation2 + $0x8] sm:$0xff] 0.0
  $region37: #{mpnn_model_forward.4} parent=0 // pred_fallthru
    _
  %s260 = sld [smem:[#allocation4]]
  %p261 = scmp.ge.s32.totalorder 0, %s260
  %s262 = sld [smem:[#allocation5]]
  %p263 = scmp.le.s32.totalorder 0, %s262
  %p264 = pnand %p261, %p263
  %p265 = pneg %p264
  // Predicated region
  $region38: #{mpnn_model_forward.4} parent=0 // pred_check
    _
  $region39: #{mpnn_model_forward.4} parent=0 // pred_check_branch
    %267 = sbr.rel (%p264) target = $region41
  $region40: #{mpnn_model_forward.4} parent=0 // pred_region
    %v268 = vld [vmem:[%s199] sm:$0xf]
    %v269 = vld [vmem:[%s199 + $0x4] sm:$0xf]
    %v270 = vld [vmem:[%s199 + $0x8] sm:$0xf]
    %v271 = vld [vmem:[%s199 + $0xc] sm:$0xf]
    %v272 = vld [vmem:[%s199 + $0x10] sm:$0xf]
    %v273 = vld [vmem:[%s199 + $0x14] sm:$0xf]
    %v274 = vld [vmem:[%s199 + $0x18] sm:$0xf]
    %v275 = vld [vmem:[%s199 + $0x1c] sm:$0xf]
    %v276 = vld [vmem:[%s199 + $0x20] sm:$0xf]
    %v277 = vld [vmem:[%s199 + $0x24] sm:$0xf]
    %v278 = vld [vmem:[%s199 + $0x28] sm:$0xf]
    %v279 = vld [vmem:[%s199 + $0x2c] sm:$0xf]
    %v280 = vld [vmem:[%s199 + $0x30] sm:$0xf]
    %v281 = vld [vmem:[%s199 + $0x34] sm:$0xf]
    %v282 = vld [vmem:[%s199 + $0x38] sm:$0xf]
    %v283 = vld [vmem:[%s199 + $0x3c] sm:$0xf]
    %v284 = vld [vmem:[%s7] sm:$0xf]
    %v285 = vld [vmem:[%s7 + $0x4] sm:$0xf]
    %v286 = vld [vmem:[%s7 + $0x8] sm:$0xf]
    %v287 = vld [vmem:[%s7 + $0xc] sm:$0xf]
    %v288 = vld [vmem:[%s7 + $0x10] sm:$0xf]
    %v289 = vld [vmem:[%s7 + $0x14] sm:$0xf]
    %v290 = vld [vmem:[%s7 + $0x18] sm:$0xf]
    %v291 = vld [vmem:[%s7 + $0x1c] sm:$0xf]
    %v292 = vld [vmem:[%s7 + $0x20] sm:$0xf]
    %v293 = vld [vmem:[%s7 + $0x24] sm:$0xf]
    %v294 = vld [vmem:[%s7 + $0x28] sm:$0xf]
    %v295 = vld [vmem:[%s7 + $0x2c] sm:$0xf]
    %v296 = vld [vmem:[%s7 + $0x30] sm:$0xf]
    %v297 = vld [vmem:[%s7 + $0x34] sm:$0xf]
    %v298 = vld [vmem:[%s7 + $0x38] sm:$0xf]
    %v299 = vld [vmem:[%s7 + $0x3c] sm:$0xf]
    %v300 = vld [vmem:[%s221] sm:$0xf]
    %v301 = vld [vmem:[%s221 + $0x4] sm:$0xf]
    %v302 = vld [vmem:[%s221 + $0x8] sm:$0xf]
    %v303 = vld [vmem:[%s221 + $0xc] sm:$0xf]
    %v304 = vld [vmem:[%s221 + $0x10] sm:$0xf]
    %v305 = vld [vmem:[%s221 + $0x14] sm:$0xf]
    %v306 = vld [vmem:[%s221 + $0x18] sm:$0xf]
    %v307 = vld [vmem:[%s221 + $0x1c] sm:$0xf]
    %v308 = vld [vmem:[%s221 + $0x20] sm:$0xf]
    %v309 = vld [vmem:[%s221 + $0x24] sm:$0xf]
    %v310 = vld [vmem:[%s221 + $0x28] sm:$0xf]
    %v311 = vld [vmem:[%s221 + $0x2c] sm:$0xf]
    %v312 = vld [vmem:[%s221 + $0x30] sm:$0xf]
    %v313 = vld [vmem:[%s221 + $0x34] sm:$0xf]
    %v314 = vld [vmem:[%s221 + $0x38] sm:$0xf]
    %v315 = vld [vmem:[%s221 + $0x3c] sm:$0xf]
    %s316 = scalar_lea.vmem %s7, 64
    %v317 = vld [vmem:[%s316] sm:$0xf]
    %v318 = vld [vmem:[%s316 + $0x4] sm:$0xf]
    %v319 = vld [vmem:[%s316 + $0x8] sm:$0xf]
    %v320 = vld [vmem:[%s316 + $0xc] sm:$0xf]
    %v321 = vld [vmem:[%s316 + $0x10] sm:$0xf]
    %v322 = vld [vmem:[%s316 + $0x14] sm:$0xf]
    %v323 = vld [vmem:[%s316 + $0x18] sm:$0xf]
    %v324 = vld [vmem:[%s316 + $0x1c] sm:$0xf]
    %v325 = vld [vmem:[%s316 + $0x20] sm:$0xf]
    %v326 = vld [vmem:[%s316 + $0x24] sm:$0xf]
    %v327 = vld [vmem:[%s316 + $0x28] sm:$0xf]
    %v328 = vld [vmem:[%s316 + $0x2c] sm:$0xf]
    %v329 = vld [vmem:[%s316 + $0x30] sm:$0xf]
    %v330 = vld [vmem:[%s316 + $0x34] sm:$0xf]
    %v331 = vld [vmem:[%s316 + $0x38] sm:$0xf]
    %v332 = vld [vmem:[%s316 + $0x3c] sm:$0xf]
    %v349 = vunpack.c.l.b16 %v300
    %v350 = vunpack.c.l.b16 %v301
    %v351 = vunpack.c.l.b16 %v302
    %v352 = vunpack.c.l.b16 %v303
    %v353 = vunpack.c.l.b16 %v304
    %v354 = vunpack.c.l.b16 %v305
    %v355 = vunpack.c.l.b16 %v306
    %v356 = vunpack.c.l.b16 %v307
    %v357 = vunpack.c.l.b16 %v308
    %v358 = vunpack.c.l.b16 %v309
    %v359 = vunpack.c.l.b16 %v310
    %v360 = vunpack.c.l.b16 %v311
    %v361 = vunpack.c.l.b16 %v312
    %v362 = vunpack.c.l.b16 %v313
    %v363 = vunpack.c.l.b16 %v314
    %v364 = vunpack.c.l.b16 %v315
    %v365 = vpack.c.b16 %v350, %v349
    %v366 = vpack.c.b16 %v352, %v351
    %v367 = vpack.c.b16 %v354, %v353
    %v368 = vpack.c.b16 %v356, %v355
    %v369 = vpack.c.b16 %v358, %v357
    %v370 = vpack.c.b16 %v360, %v359
    %v371 = vpack.c.b16 %v362, %v361
    %v372 = vpack.c.b16 %v364, %v363
    %v397 = vunpack.c.l.b16 %v317
    %v398 = vunpack.c.l.b16 %v318
    %v399 = vunpack.c.l.b16 %v319
    %v400 = vunpack.c.l.b16 %v320
    %v401 = vunpack.c.l.b16 %v321
    %v402 = vunpack.c.l.b16 %v322
    %v403 = vunpack.c.l.b16 %v323
    %v404 = vunpack.c.l.b16 %v324
    %v405 = vunpack.c.l.b16 %v325
    %v406 = vunpack.c.l.b16 %v326
    %v407 = vunpack.c.l.b16 %v327
    %v408 = vunpack.c.l.b16 %v328
    %v409 = vunpack.c.l.b16 %v329
    %v410 = vunpack.c.l.b16 %v330
    %v411 = vunpack.c.l.b16 %v331
    %v412 = vunpack.c.l.b16 %v332
    %v413 = vpack.c.b16 %v398, %v397
    %v414 = vpack.c.b16 %v400, %v399
    %v415 = vpack.c.b16 %v402, %v401
    %v416 = vpack.c.b16 %v404, %v403
    %v417 = vpack.c.b16 %v406, %v405
    %v418 = vpack.c.b16 %v408, %v407
    %v419 = vpack.c.b16 %v410, %v409
    %v420 = vpack.c.b16 %v412, %v411
    %429 = vmatpush.bf16.msra.mxu0 %v420
    %430 = vmatpush.bf16.msra.mxu0 %v419
    %431 = vmatpush.bf16.msra.mxu0 %v418
    %432 = vmatpush.bf16.msra.mxu0 %v417
    %433 = vmatpush.bf16.msra.mxu0 %v416
    %434 = vmatpush.bf16.msra.mxu0 %v415
    %435 = vmatpush.bf16.msra.mxu0 %v414
    %436 = vmatpush.bf16.msra.mxu0 %v413
    %437 = vmatmul.bf16.gmra.mxu0 %v365
    %v438 = vpop.f32.mrf.mxu0
    %v439 = vadd.f32 0.0, %v438
    %v440 = vpop.f32.mrf.mxu0
    %v441 = vadd.f32 0.0, %v440
    %442 = vmatmul.bf16.gmra.mxu0 %v366
    %v443 = vpop.f32.mrf.mxu0
    %v444 = vadd.f32 0.0, %v443
    %v445 = vpop.f32.mrf.mxu0
    %v446 = vadd.f32 0.0, %v445
    %447 = vmatmul.bf16.gmra.mxu0 %v367
    %v448 = vpop.f32.mrf.mxu0
    %v449 = vadd.f32 0.0, %v448
    %v450 = vpop.f32.mrf.mxu0
    %v451 = vadd.f32 0.0, %v450
    %452 = vmatmul.bf16.gmra.mxu0 %v368
    %v453 = vpop.f32.mrf.mxu0
    %v454 = vadd.f32 0.0, %v453
    %v455 = vpop.f32.mrf.mxu0
    %v456 = vadd.f32 0.0, %v455
    %457 = vmatmul.bf16.gmra.mxu0 %v369
    %v458 = vpop.f32.mrf.mxu0
    %v459 = vadd.f32 0.0, %v458
    %v460 = vpop.f32.mrf.mxu0
    %v461 = vadd.f32 0.0, %v460
    %462 = vmatmul.bf16.gmra.mxu0 %v370
    %v463 = vpop.f32.mrf.mxu0
    %v464 = vadd.f32 0.0, %v463
    %v465 = vpop.f32.mrf.mxu0
    %v466 = vadd.f32 0.0, %v465
    %467 = vmatmul.bf16.gmra.mxu0 %v371
    %v468 = vpop.f32.mrf.mxu0
    %v469 = vadd.f32 0.0, %v468
    %v470 = vpop.f32.mrf.mxu0
    %v471 = vadd.f32 0.0, %v470
    %472 = vmatmul.bf16.gmra.mxu0 %v372
    %v473 = vpop.f32.mrf.mxu0
    %v474 = vadd.f32 0.0, %v473
    %v475 = vpop.f32.mrf.mxu0
    %v476 = vadd.f32 0.0, %v475
    %477 = vdwg.mxu0
    %v494 = vunpack.c.l.b16 %v268
    %v495 = vunpack.c.l.b16 %v269
    %v496 = vunpack.c.l.b16 %v270
    %v497 = vunpack.c.l.b16 %v271
    %v498 = vunpack.c.l.b16 %v272
    %v499 = vunpack.c.l.b16 %v273
    %v500 = vunpack.c.l.b16 %v274
    %v501 = vunpack.c.l.b16 %v275
    %v502 = vunpack.c.l.b16 %v276
    %v503 = vunpack.c.l.b16 %v277
    %v504 = vunpack.c.l.b16 %v278
    %v505 = vunpack.c.l.b16 %v279
    %v506 = vunpack.c.l.b16 %v280
    %v507 = vunpack.c.l.b16 %v281
    %v508 = vunpack.c.l.b16 %v282
    %v509 = vunpack.c.l.b16 %v283
    %v510 = vpack.c.b16 %v495, %v494
    %v511 = vpack.c.b16 %v497, %v496
    %v512 = vpack.c.b16 %v499, %v498
    %v513 = vpack.c.b16 %v501, %v500
    %v514 = vpack.c.b16 %v503, %v502
    %v515 = vpack.c.b16 %v505, %v504
    %v516 = vpack.c.b16 %v507, %v506
    %v517 = vpack.c.b16 %v509, %v508
    %v542 = vunpack.c.l.b16 %v284
    %v543 = vunpack.c.l.b16 %v285
    %v544 = vunpack.c.l.b16 %v286
    %v545 = vunpack.c.l.b16 %v287
    %v546 = vunpack.c.l.b16 %v288
    %v547 = vunpack.c.l.b16 %v289
    %v548 = vunpack.c.l.b16 %v290
    %v549 = vunpack.c.l.b16 %v291
    %v550 = vunpack.c.l.b16 %v292
    %v551 = vunpack.c.l.b16 %v293
    %v552 = vunpack.c.l.b16 %v294
    %v553 = vunpack.c.l.b16 %v295
    %v554 = vunpack.c.l.b16 %v296
    %v555 = vunpack.c.l.b16 %v297
    %v556 = vunpack.c.l.b16 %v298
    %v557 = vunpack.c.l.b16 %v299
    %v558 = vpack.c.b16 %v543, %v542
    %v559 = vpack.c.b16 %v545, %v544
    %v560 = vpack.c.b16 %v547, %v546
    %v561 = vpack.c.b16 %v549, %v548
    %v562 = vpack.c.b16 %v551, %v550
    %v563 = vpack.c.b16 %v553, %v552
    %v564 = vpack.c.b16 %v555, %v554
    %v565 = vpack.c.b16 %v557, %v556
    %574 = vmatpush.bf16.msra.mxu0 %v565
    %575 = vmatpush.bf16.msra.mxu0 %v564
    %576 = vmatpush.bf16.msra.mxu0 %v563
    %577 = vmatpush.bf16.msra.mxu0 %v562
    %578 = vmatpush.bf16.msra.mxu0 %v561
    %579 = vmatpush.bf16.msra.mxu0 %v560
    %580 = vmatpush.bf16.msra.mxu0 %v559
    %581 = vmatpush.bf16.msra.mxu0 %v558
    %582 = vmatmul.bf16.gmra.mxu0 %v510
    %v583 = vpop.f32.mrf.mxu0
    %v584 = vadd.f32 %v439, %v583
    %v585 = vpop.f32.mrf.mxu0
    %v586 = vadd.f32 %v441, %v585
    %587 = vmatmul.bf16.gmra.mxu0 %v511
    %v588 = vpop.f32.mrf.mxu0
    %v589 = vadd.f32 %v444, %v588
    %v590 = vpop.f32.mrf.mxu0
    %v591 = vadd.f32 %v446, %v590
    %592 = vmatmul.bf16.gmra.mxu0 %v512
    %v593 = vpop.f32.mrf.mxu0
    %v594 = vadd.f32 %v449, %v593
    %v595 = vpop.f32.mrf.mxu0
    %v596 = vadd.f32 %v451, %v595
    %597 = vmatmul.bf16.gmra.mxu0 %v513
    %v598 = vpop.f32.mrf.mxu0
    %v599 = vadd.f32 %v454, %v598
    %v600 = vpop.f32.mrf.mxu0
    %v601 = vadd.f32 %v456, %v600
    %602 = vmatmul.bf16.gmra.mxu0 %v514
    %v603 = vpop.f32.mrf.mxu0
    %v604 = vadd.f32 %v459, %v603
    %v605 = vpop.f32.mrf.mxu0
    %v606 = vadd.f32 %v461, %v605
    %607 = vmatmul.bf16.gmra.mxu0 %v515
    %v608 = vpop.f32.mrf.mxu0
    %v609 = vadd.f32 %v464, %v608
    %v610 = vpop.f32.mrf.mxu0
    %v611 = vadd.f32 %v466, %v610
    %612 = vmatmul.bf16.gmra.mxu0 %v516
    %v613 = vpop.f32.mrf.mxu0
    %v614 = vadd.f32 %v469, %v613
    %v615 = vpop.f32.mrf.mxu0
    %v616 = vadd.f32 %v471, %v615
    %617 = vmatmul.bf16.gmra.mxu0 %v517
    %v618 = vpop.f32.mrf.mxu0
    %v619 = vadd.f32 %v474, %v618
    %v620 = vpop.f32.mrf.mxu0
    %v621 = vadd.f32 %v476, %v620
    %622 = vdwg.mxu0
    %v623 = vld [vmem:[%s243] sm:$0xf]
    %v624 = vld [vmem:[%s243 + $0x4] sm:$0xf]
    %v625 = vld [vmem:[%s243 + $0x8] sm:$0xf]
    %v626 = vld [vmem:[%s243 + $0xc] sm:$0xf]
    %v627 = vld [vmem:[%s243 + $0x10] sm:$0xf]
    %v628 = vld [vmem:[%s243 + $0x14] sm:$0xf]
    %v629 = vld [vmem:[%s243 + $0x18] sm:$0xf]
    %v630 = vld [vmem:[%s243 + $0x1c] sm:$0xf]
    %v631 = vld [vmem:[%s243 + $0x20] sm:$0xf]
    %v632 = vld [vmem:[%s243 + $0x24] sm:$0xf]
    %v633 = vld [vmem:[%s243 + $0x28] sm:$0xf]
    %v634 = vld [vmem:[%s243 + $0x2c] sm:$0xf]
    %v635 = vld [vmem:[%s243 + $0x30] sm:$0xf]
    %v636 = vld [vmem:[%s243 + $0x34] sm:$0xf]
    %v637 = vld [vmem:[%s243 + $0x38] sm:$0xf]
    %v638 = vld [vmem:[%s243 + $0x3c] sm:$0xf]
    %v639 = vld [vmem:[%s8] sm:$0x3]
    %v656 = vunpack.c.l.b16 %v623
    %v657 = vunpack.c.l.b16 %v624
    %v658 = vunpack.c.l.b16 %v625
    %v659 = vunpack.c.l.b16 %v626
    %v660 = vunpack.c.l.b16 %v627
    %v661 = vunpack.c.l.b16 %v628
    %v662 = vunpack.c.l.b16 %v629
    %v663 = vunpack.c.l.b16 %v630
    %v664 = vunpack.c.l.b16 %v631
    %v665 = vunpack.c.l.b16 %v632
    %v666 = vunpack.c.l.b16 %v633
    %v667 = vunpack.c.l.b16 %v634
    %v668 = vunpack.c.l.b16 %v635
    %v669 = vunpack.c.l.b16 %v636
    %v670 = vunpack.c.l.b16 %v637
    %v671 = vunpack.c.l.b16 %v638
    %v672 = vpack.c.b16 %v657, %v656
    %v673 = vpack.c.b16 %v659, %v658
    %v674 = vpack.c.b16 %v661, %v660
    %v675 = vpack.c.b16 %v663, %v662
    %v676 = vpack.c.b16 %v665, %v664
    %v677 = vpack.c.b16 %v667, %v666
    %v678 = vpack.c.b16 %v669, %v668
    %v679 = vpack.c.b16 %v671, %v670
    %vm680 = vcmask 31744
    %v682 = vsel %vm680, %v672, 0
    %v685 = vsel %vm680, %v673, 0
    %v688 = vsel %vm680, %v674, 0
    %v691 = vsel %vm680, %v675, 0
    %v694 = vsel %vm680, %v676, 0
    %v697 = vsel %vm680, %v677, 0
    %v700 = vsel %vm680, %v678, 0
    %v703 = vsel %vm680, %v679, 0
    %vm705 = vcmask 1041408
    %v707 = vsel %vm705, %v639, 0
    %709 = vmatpush.bf16.msra.mxu0 0
    %710 = vmatpush.bf16.msra.mxu0 0
    %711 = vmatpush.bf16.msra.mxu0 0
    %712 = vmatpush.bf16.msra.mxu0 0
    %713 = vmatpush.bf16.msra.mxu0 0
    %714 = vmatpush.bf16.msra.mxu0 0
    %715 = vmatpush.bf16.msra.mxu0 0
    %716 = vmatpush.bf16.msra.mxu0 %v707
    %717 = vmatmul.bf16.gmra.mxu0 %v682
    %v718 = vpop.f32.mrf.mxu0
    %v719 = vadd.f32 0.0, %v718
    %v720 = vpop.f32.mrf.mxu0
    %v721 = vadd.f32 0.0, %v720
    %722 = vmatmul.bf16.gmra.mxu0 %v685
    %v723 = vpop.f32.mrf.mxu0
    %v724 = vadd.f32 0.0, %v723
    %v725 = vpop.f32.mrf.mxu0
    %v726 = vadd.f32 0.0, %v725
    %727 = vmatmul.bf16.gmra.mxu0 %v688
    %v728 = vpop.f32.mrf.mxu0
    %v729 = vadd.f32 0.0, %v728
    %v730 = vpop.f32.mrf.mxu0
    %v731 = vadd.f32 0.0, %v730
    %732 = vmatmul.bf16.gmra.mxu0 %v691
    %v733 = vpop.f32.mrf.mxu0
    %v734 = vadd.f32 0.0, %v733
    %v735 = vpop.f32.mrf.mxu0
    %v736 = vadd.f32 0.0, %v735
    %737 = vmatmul.bf16.gmra.mxu0 %v694
    %v738 = vpop.f32.mrf.mxu0
    %v739 = vadd.f32 0.0, %v738
    %v740 = vpop.f32.mrf.mxu0
    %v741 = vadd.f32 0.0, %v740
    %742 = vmatmul.bf16.gmra.mxu0 %v697
    %v743 = vpop.f32.mrf.mxu0
    %v744 = vadd.f32 0.0, %v743
    %v745 = vpop.f32.mrf.mxu0
    %v746 = vadd.f32 0.0, %v745
    %747 = vmatmul.bf16.gmra.mxu0 %v700
    %v748 = vpop.f32.mrf.mxu0
    %v749 = vadd.f32 0.0, %v748
    %v750 = vpop.f32.mrf.mxu0
    %v751 = vadd.f32 0.0, %v750
    %752 = vmatmul.bf16.gmra.mxu0 %v703
    %v753 = vpop.f32.mrf.mxu0
    %v754 = vadd.f32 0.0, %v753
    %v755 = vpop.f32.mrf.mxu0
    %v756 = vadd.f32 0.0, %v755
    %757 = vdwg.mxu0
    %v758 = vadd.f32 %v584, %v719
    %v759 = vadd.f32 %v586, %v721
    %v760 = vadd.f32 %v589, %v724
    %v761 = vadd.f32 %v591, %v726
    %v762 = vadd.f32 %v594, %v729
    %v763 = vadd.f32 %v596, %v731
    %v764 = vadd.f32 %v599, %v734
    %v765 = vadd.f32 %v601, %v736
    %v766 = vadd.f32 %v604, %v739
    %v767 = vadd.f32 %v606, %v741
    %v768 = vadd.f32 %v609, %v744
    %v769 = vadd.f32 %v611, %v746
    %v770 = vadd.f32 %v614, %v749
    %v771 = vadd.f32 %v616, %v751
    %v772 = vadd.f32 %v619, %v754
    %v773 = vadd.f32 %v621, %v756
    %v774 = vld [vmem:[%s9] sm:$0x1]
    %v775 = vperm.slane %v774, 0
    %v776 = vadd.f32 %v758, %v775
    %v777 = vadd.f32 %v759, %v775
    %v778 = vadd.f32 %v760, %v775
    %v779 = vadd.f32 %v761, %v775
    %v780 = vadd.f32 %v762, %v775
    %v781 = vadd.f32 %v763, %v775
    %v782 = vadd.f32 %v764, %v775
    %v783 = vadd.f32 %v765, %v775
    %v784 = vadd.f32 %v766, %v775
    %v785 = vadd.f32 %v767, %v775
    %v786 = vadd.f32 %v768, %v775
    %v787 = vadd.f32 %v769, %v775
    %v788 = vadd.f32 %v770, %v775
    %v789 = vadd.f32 %v771, %v775
    %v790 = vadd.f32 %v772, %v775
    %v791 = vadd.f32 %v773, %v775
    %v792 = vmax.f32 %v776, 0.0
    %v793 = vmax.f32 %v777, 0.0
    %v794 = vmax.f32 %v778, 0.0
    %v795 = vmax.f32 %v779, 0.0
    %v796 = vmax.f32 %v780, 0.0
    %v797 = vmax.f32 %v781, 0.0
    %v798 = vmax.f32 %v782, 0.0
    %v799 = vmax.f32 %v783, 0.0
    %v800 = vmax.f32 %v784, 0.0
    %v801 = vmax.f32 %v785, 0.0
    %v802 = vmax.f32 %v786, 0.0
    %v803 = vmax.f32 %v787, 0.0
    %v804 = vmax.f32 %v788, 0.0
    %v805 = vmax.f32 %v789, 0.0
    %v806 = vmax.f32 %v790, 0.0
    %v807 = vmax.f32 %v791, 0.0
    %v808 = vpack.c.bf16 %v793, %v792
    %v809 = vpack.c.bf16 %v795, %v794
    %v810 = vpack.c.bf16 %v797, %v796
    %v811 = vpack.c.bf16 %v799, %v798
    %v812 = vpack.c.bf16 %v801, %v800
    %v813 = vpack.c.bf16 %v803, %v802
    %v814 = vpack.c.bf16 %v805, %v804
    %v815 = vpack.c.bf16 %v807, %v806
    %s816 = scalar_lea.vmem %s7, 128
    %v817 = vld [vmem:[%s816] sm:$0xf]
    %v818 = vld [vmem:[%s816 + $0x4] sm:$0xf]
    %v819 = vld [vmem:[%s816 + $0x8] sm:$0xf]
    %v820 = vld [vmem:[%s816 + $0xc] sm:$0xf]
    %v821 = vld [vmem:[%s816 + $0x10] sm:$0xf]
    %v822 = vld [vmem:[%s816 + $0x14] sm:$0xf]
    %v823 = vld [vmem:[%s816 + $0x18] sm:$0xf]
    %v824 = vld [vmem:[%s816 + $0x1c] sm:$0xf]
    %v825 = vld [vmem:[%s816 + $0x20] sm:$0xf]
    %v826 = vld [vmem:[%s816 + $0x24] sm:$0xf]
    %v827 = vld [vmem:[%s816 + $0x28] sm:$0xf]
    %v828 = vld [vmem:[%s816 + $0x2c] sm:$0xf]
    %v829 = vld [vmem:[%s816 + $0x30] sm:$0xf]
    %v830 = vld [vmem:[%s816 + $0x34] sm:$0xf]
    %v831 = vld [vmem:[%s816 + $0x38] sm:$0xf]
    %v832 = vld [vmem:[%s816 + $0x3c] sm:$0xf]
    %v833 = vld [vmem:[%s9 + $0x1] sm:$0x1]
    %v834 = vperm.slane %v833, 0
    %v851 = vunpack.c.l.b16 %v817
    %v852 = vunpack.c.l.b16 %v818
    %v853 = vunpack.c.l.b16 %v819
    %v854 = vunpack.c.l.b16 %v820
    %v855 = vunpack.c.l.b16 %v821
    %v856 = vunpack.c.l.b16 %v822
    %v857 = vunpack.c.l.b16 %v823
    %v858 = vunpack.c.l.b16 %v824
    %v859 = vunpack.c.l.b16 %v825
    %v860 = vunpack.c.l.b16 %v826
    %v861 = vunpack.c.l.b16 %v827
    %v862 = vunpack.c.l.b16 %v828
    %v863 = vunpack.c.l.b16 %v829
    %v864 = vunpack.c.l.b16 %v830
    %v865 = vunpack.c.l.b16 %v831
    %v866 = vunpack.c.l.b16 %v832
    %v867 = vpack.c.b16 %v852, %v851
    %v868 = vpack.c.b16 %v854, %v853
    %v869 = vpack.c.b16 %v856, %v855
    %v870 = vpack.c.b16 %v858, %v857
    %v871 = vpack.c.b16 %v860, %v859
    %v872 = vpack.c.b16 %v862, %v861
    %v873 = vpack.c.b16 %v864, %v863
    %v874 = vpack.c.b16 %v866, %v865
    %883 = vmatpush.bf16.msra.mxu0 %v874
    %884 = vmatpush.bf16.msra.mxu0 %v873
    %885 = vmatpush.bf16.msra.mxu0 %v872
    %886 = vmatpush.bf16.msra.mxu0 %v871
    %887 = vmatpush.bf16.msra.mxu0 %v870
    %888 = vmatpush.bf16.msra.mxu0 %v869
    %889 = vmatpush.bf16.msra.mxu0 %v868
    %890 = vmatpush.bf16.msra.mxu0 %v867
    %891 = vmatmul.bf16.gmra.mxu0 %v808
    %v892 = vpop.f32.mrf.mxu0
    %v893 = vadd.f32 %v834, %v892
    %v894 = vpop.f32.mrf.mxu0
    %v895 = vadd.f32 %v834, %v894
    %896 = vmatmul.bf16.gmra.mxu0 %v809
    %v897 = vpop.f32.mrf.mxu0
    %v898 = vadd.f32 %v834, %v897
    %v899 = vpop.f32.mrf.mxu0
    %v900 = vadd.f32 %v834, %v899
    %901 = vmatmul.bf16.gmra.mxu0 %v810
    %v902 = vpop.f32.mrf.mxu0
    %v903 = vadd.f32 %v834, %v902
    %v904 = vpop.f32.mrf.mxu0
    %v905 = vadd.f32 %v834, %v904
    %906 = vmatmul.bf16.gmra.mxu0 %v811
    %v907 = vpop.f32.mrf.mxu0
    %v908 = vadd.f32 %v834, %v907
    %v909 = vpop.f32.mrf.mxu0
    %v910 = vadd.f32 %v834, %v909
    %911 = vmatmul.bf16.gmra.mxu0 %v812
    %v912 = vpop.f32.mrf.mxu0
    %v913 = vadd.f32 %v834, %v912
    %v914 = vpop.f32.mrf.mxu0
    %v915 = vadd.f32 %v834, %v914
    %916 = vmatmul.bf16.gmra.mxu0 %v813
    %v917 = vpop.f32.mrf.mxu0
    %v918 = vadd.f32 %v834, %v917
    %v919 = vpop.f32.mrf.mxu0
    %v920 = vadd.f32 %v834, %v919
    %921 = vmatmul.bf16.gmra.mxu0 %v814
    %v922 = vpop.f32.mrf.mxu0
    %v923 = vadd.f32 %v834, %v922
    %v924 = vpop.f32.mrf.mxu0
    %v925 = vadd.f32 %v834, %v924
    %926 = vmatmul.bf16.gmra.mxu0 %v815
    %v927 = vpop.f32.mrf.mxu0
    %v928 = vadd.f32 %v834, %v927
    %v929 = vpop.f32.mrf.mxu0
    %v930 = vadd.f32 %v834, %v929
    %931 = vdwg.mxu0
    %v932 = vmax.f32 %v893, 0.0
    %v933 = vmax.f32 %v895, 0.0
    %v934 = vmax.f32 %v898, 0.0
    %v935 = vmax.f32 %v900, 0.0
    %v936 = vmax.f32 %v903, 0.0
    %v937 = vmax.f32 %v905, 0.0
    %v938 = vmax.f32 %v908, 0.0
    %v939 = vmax.f32 %v910, 0.0
    %v940 = vmax.f32 %v913, 0.0
    %v941 = vmax.f32 %v915, 0.0
    %v942 = vmax.f32 %v918, 0.0
    %v943 = vmax.f32 %v920, 0.0
    %v944 = vmax.f32 %v923, 0.0
    %v945 = vmax.f32 %v925, 0.0
    %v946 = vmax.f32 %v928, 0.0
    %v947 = vmax.f32 %v930, 0.0
    %v948 = vld [vmem:[%s178] sm:$0x1]
    %s949 = smul.u32 0, 16
    %v950 = vstv %s949
    %v951 = vsub.s32 %v948, %v950
    %v952 = vlaneseq
    %v953 = vshrl.u32 %v952, 7
    %v954 = vadd.s32 %v953, 8
    %v955 = vperm.slane %v951, 0
    %vm956 = vcmp.eq.s32.totalorder %v953, %v955
    %vm957 = vcmp.eq.s32.totalorder %v954, %v955
    %v958 = vsel %vm956, 1, 0
    %v959 = vsel %vm957, 1, 0
    %v960 = vcvt.s32.f32 %v958
    %v961 = vcvt.s32.f32 %v959
    %v962 = vpack.c.bf16 %v961, %v960
    %v963 = vld [vmem:[#allocation2] sm:$0xff]
    %v964 = vld [vmem:[#allocation2 + $0x8] sm:$0xff]
    %v965 = vpack.c.bf16 %v933, %v932
    %v966 = vpack.c.bf16 %v935, %v934
    %v967 = vpack.c.bf16 %v937, %v936
    %v968 = vpack.c.bf16 %v939, %v938
    %v969 = vpack.c.bf16 %v941, %v940
    %v970 = vpack.c.bf16 %v943, %v942
    %v971 = vpack.c.bf16 %v945, %v944
    %v972 = vpack.c.bf16 %v947, %v946
    %973 = vmatpush.bf16.msra.mxu0 %v972
    %974 = vmatpush.bf16.msra.mxu0 %v971
    %975 = vmatpush.bf16.msra.mxu0 %v970
    %976 = vmatpush.bf16.msra.mxu0 %v969
    %977 = vmatpush.bf16.msra.mxu0 %v968
    %978 = vmatpush.bf16.msra.mxu0 %v967
    %979 = vmatpush.bf16.msra.mxu0 %v966
    %980 = vmatpush.bf16.msra.mxu0 %v965
    %981 = vmatmul.bf16.gmra.mxu0 %v962
    %v982 = vpop.f32.mrf.mxu0
    %v983 = vadd.f32 0.0, %v982
    %v984 = vpop.f32.mrf.mxu0
    %v985 = vadd.f32 0.0, %v984
    %986 = vdwg.mxu0
    %v987 = vadd.f32 %v963, %v983
    %v988 = vadd.f32 %v964, %v985
    %989 = vst [vmem:[#allocation2] sm:$0xff] %v987
    %990 = vst [vmem:[#allocation2 + $0x8] sm:$0xff] %v988
  $region41: #{mpnn_model_forward.4} parent=0 // pred_fallthru
    _
  // Predicated region
  $region42: #{mpnn_model_forward.4} parent=0 // pred_check
    %p991 = pneg %p254
  $region43: #{mpnn_model_forward.4} parent=0 // pred_check_branch
    %993 = sbr.rel (%p991) target = $region45
  $region44: #{mpnn_model_forward.4} parent=0 // pred_region
    %v994 = vld [vmem:[%s6] sm:$0xff]
    %v995 = vld [vmem:[%s6 + $0x8] sm:$0xff]
    %v996 = vpack.c.bf16 %v995, %v994
    %s997 = scalar_lea.vmem %s7, 192
    %v998 = vld [vmem:[%s997] sm:$0xf]
    %v999 = vld [vmem:[%s997 + $0x4] sm:$0xf]
    %v1000 = vld [vmem:[%s997 + $0x8] sm:$0xf]
    %v1001 = vld [vmem:[%s997 + $0xc] sm:$0xf]
    %v1002 = vld [vmem:[%s997 + $0x10] sm:$0xf]
    %v1003 = vld [vmem:[%s997 + $0x14] sm:$0xf]
    %v1004 = vld [vmem:[%s997 + $0x18] sm:$0xf]
    %v1005 = vld [vmem:[%s997 + $0x1c] sm:$0xf]
    %v1006 = vld [vmem:[%s997 + $0x20] sm:$0xf]
    %v1007 = vld [vmem:[%s997 + $0x24] sm:$0xf]
    %v1008 = vld [vmem:[%s997 + $0x28] sm:$0xf]
    %v1009 = vld [vmem:[%s997 + $0x2c] sm:$0xf]
    %v1010 = vld [vmem:[%s997 + $0x30] sm:$0xf]
    %v1011 = vld [vmem:[%s997 + $0x34] sm:$0xf]
    %v1012 = vld [vmem:[%s997 + $0x38] sm:$0xf]
    %v1013 = vld [vmem:[%s997 + $0x3c] sm:$0xf]
    %v1014 = vld [vmem:[#allocation2] sm:$0xff]
    %v1015 = vld [vmem:[#allocation2 + $0x8] sm:$0xff]
    %v1016 = vpack.c.bf16 %v1015, %v1014
    %s1017 = scalar_lea.vmem %s7, 256
    %v1018 = vld [vmem:[%s1017] sm:$0xf]
    %v1019 = vld [vmem:[%s1017 + $0x4] sm:$0xf]
    %v1020 = vld [vmem:[%s1017 + $0x8] sm:$0xf]
    %v1021 = vld [vmem:[%s1017 + $0xc] sm:$0xf]
    %v1022 = vld [vmem:[%s1017 + $0x10] sm:$0xf]
    %v1023 = vld [vmem:[%s1017 + $0x14] sm:$0xf]
    %v1024 = vld [vmem:[%s1017 + $0x18] sm:$0xf]
    %v1025 = vld [vmem:[%s1017 + $0x1c] sm:$0xf]
    %v1026 = vld [vmem:[%s1017 + $0x20] sm:$0xf]
    %v1027 = vld [vmem:[%s1017 + $0x24] sm:$0xf]
    %v1028 = vld [vmem:[%s1017 + $0x28] sm:$0xf]
    %v1029 = vld [vmem:[%s1017 + $0x2c] sm:$0xf]
    %v1030 = vld [vmem:[%s1017 + $0x30] sm:$0xf]
    %v1031 = vld [vmem:[%s1017 + $0x34] sm:$0xf]
    %v1032 = vld [vmem:[%s1017 + $0x38] sm:$0xf]
    %v1033 = vld [vmem:[%s1017 + $0x3c] sm:$0xf]
    %v1050 = vunpack.c.l.b16 %v1018
    %v1051 = vunpack.c.l.b16 %v1019
    %v1052 = vunpack.c.l.b16 %v1020
    %v1053 = vunpack.c.l.b16 %v1021
    %v1054 = vunpack.c.l.b16 %v1022
    %v1055 = vunpack.c.l.b16 %v1023
    %v1056 = vunpack.c.l.b16 %v1024
    %v1057 = vunpack.c.l.b16 %v1025
    %v1058 = vunpack.c.l.b16 %v1026
    %v1059 = vunpack.c.l.b16 %v1027
    %v1060 = vunpack.c.l.b16 %v1028
    %v1061 = vunpack.c.l.b16 %v1029
    %v1062 = vunpack.c.l.b16 %v1030
    %v1063 = vunpack.c.l.b16 %v1031
    %v1064 = vunpack.c.l.b16 %v1032
    %v1065 = vunpack.c.l.b16 %v1033
    %v1066 = vpack.c.b16 %v1051, %v1050
    %v1067 = vpack.c.b16 %v1053, %v1052
    %v1068 = vpack.c.b16 %v1055, %v1054
    %v1069 = vpack.c.b16 %v1057, %v1056
    %v1070 = vpack.c.b16 %v1059, %v1058
    %v1071 = vpack.c.b16 %v1061, %v1060
    %v1072 = vpack.c.b16 %v1063, %v1062
    %v1073 = vpack.c.b16 %v1065, %v1064
    %1082 = vmatpush.bf16.msra.mxu0 %v1073
    %1083 = vmatpush.bf16.msra.mxu0 %v1072
    %1084 = vmatpush.bf16.msra.mxu0 %v1071
    %1085 = vmatpush.bf16.msra.mxu0 %v1070
    %1086 = vmatpush.bf16.msra.mxu0 %v1069
    %1087 = vmatpush.bf16.msra.mxu0 %v1068
    %1088 = vmatpush.bf16.msra.mxu0 %v1067
    %1089 = vmatpush.bf16.msra.mxu0 %v1066
    %1090 = vmatmul.bf16.gmra.mxu0 %v1016
    %v1091 = vpop.f32.mrf.mxu0
    %v1092 = vadd.f32 0.0, %v1091
    %v1093 = vpop.f32.mrf.mxu0
    %v1094 = vadd.f32 0.0, %v1093
    %1095 = vdwg.mxu0
    %v1112 = vunpack.c.l.b16 %v998
    %v1113 = vunpack.c.l.b16 %v999
    %v1114 = vunpack.c.l.b16 %v1000
    %v1115 = vunpack.c.l.b16 %v1001
    %v1116 = vunpack.c.l.b16 %v1002
    %v1117 = vunpack.c.l.b16 %v1003
    %v1118 = vunpack.c.l.b16 %v1004
    %v1119 = vunpack.c.l.b16 %v1005
    %v1120 = vunpack.c.l.b16 %v1006
    %v1121 = vunpack.c.l.b16 %v1007
    %v1122 = vunpack.c.l.b16 %v1008
    %v1123 = vunpack.c.l.b16 %v1009
    %v1124 = vunpack.c.l.b16 %v1010
    %v1125 = vunpack.c.l.b16 %v1011
    %v1126 = vunpack.c.l.b16 %v1012
    %v1127 = vunpack.c.l.b16 %v1013
    %v1128 = vpack.c.b16 %v1113, %v1112
    %v1129 = vpack.c.b16 %v1115, %v1114
    %v1130 = vpack.c.b16 %v1117, %v1116
    %v1131 = vpack.c.b16 %v1119, %v1118
    %v1132 = vpack.c.b16 %v1121, %v1120
    %v1133 = vpack.c.b16 %v1123, %v1122
    %v1134 = vpack.c.b16 %v1125, %v1124
    %v1135 = vpack.c.b16 %v1127, %v1126
    %1144 = vmatpush.bf16.msra.mxu0 %v1135
    %1145 = vmatpush.bf16.msra.mxu0 %v1134
    %1146 = vmatpush.bf16.msra.mxu0 %v1133
    %1147 = vmatpush.bf16.msra.mxu0 %v1132
    %1148 = vmatpush.bf16.msra.mxu0 %v1131
    %1149 = vmatpush.bf16.msra.mxu0 %v1130
    %1150 = vmatpush.bf16.msra.mxu0 %v1129
    %1151 = vmatpush.bf16.msra.mxu0 %v1128
    %1152 = vmatmul.bf16.gmra.mxu0 %v996
    %v1153 = vpop.f32.mrf.mxu0
    %v1154 = vadd.f32 %v1092, %v1153
    %v1155 = vpop.f32.mrf.mxu0
    %v1156 = vadd.f32 %v1094, %v1155
    %1157 = vdwg.mxu0
    %v1158 = vld [vmem:[%s9 + $0x2] sm:$0x1]
    %v1159 = vperm.slane %v1158, 0
    %v1160 = vadd.f32 %v1154, %v1159
    %v1161 = vadd.f32 %v1156, %v1159
    %v1162 = vmax.f32 %v1160, 0.0
    %v1163 = vmax.f32 %v1161, 0.0
    %v1164 = vpack.c.bf16 %v1163, %v1162
    %s1165 = scalar_lea.vmem %s7, 320
    %v1166 = vld [vmem:[%s1165] sm:$0xf]
    %v1167 = vld [vmem:[%s1165 + $0x4] sm:$0xf]
    %v1168 = vld [vmem:[%s1165 + $0x8] sm:$0xf]
    %v1169 = vld [vmem:[%s1165 + $0xc] sm:$0xf]
    %v1170 = vld [vmem:[%s1165 + $0x10] sm:$0xf]
    %v1171 = vld [vmem:[%s1165 + $0x14] sm:$0xf]
    %v1172 = vld [vmem:[%s1165 + $0x18] sm:$0xf]
    %v1173 = vld [vmem:[%s1165 + $0x1c] sm:$0xf]
    %v1174 = vld [vmem:[%s1165 + $0x20] sm:$0xf]
    %v1175 = vld [vmem:[%s1165 + $0x24] sm:$0xf]
    %v1176 = vld [vmem:[%s1165 + $0x28] sm:$0xf]
    %v1177 = vld [vmem:[%s1165 + $0x2c] sm:$0xf]
    %v1178 = vld [vmem:[%s1165 + $0x30] sm:$0xf]
    %v1179 = vld [vmem:[%s1165 + $0x34] sm:$0xf]
    %v1180 = vld [vmem:[%s1165 + $0x38] sm:$0xf]
    %v1181 = vld [vmem:[%s1165 + $0x3c] sm:$0xf]
    %v1182 = vld [vmem:[%s9 + $0x3] sm:$0x1]
    %v1183 = vperm.slane %v1182, 0
    %v1200 = vunpack.c.l.b16 %v1166
    %v1201 = vunpack.c.l.b16 %v1167
    %v1202 = vunpack.c.l.b16 %v1168
    %v1203 = vunpack.c.l.b16 %v1169
    %v1204 = vunpack.c.l.b16 %v1170
    %v1205 = vunpack.c.l.b16 %v1171
    %v1206 = vunpack.c.l.b16 %v1172
    %v1207 = vunpack.c.l.b16 %v1173
    %v1208 = vunpack.c.l.b16 %v1174
    %v1209 = vunpack.c.l.b16 %v1175
    %v1210 = vunpack.c.l.b16 %v1176
    %v1211 = vunpack.c.l.b16 %v1177
    %v1212 = vunpack.c.l.b16 %v1178
    %v1213 = vunpack.c.l.b16 %v1179
    %v1214 = vunpack.c.l.b16 %v1180
    %v1215 = vunpack.c.l.b16 %v1181
    %v1216 = vpack.c.b16 %v1201, %v1200
    %v1217 = vpack.c.b16 %v1203, %v1202
    %v1218 = vpack.c.b16 %v1205, %v1204
    %v1219 = vpack.c.b16 %v1207, %v1206
    %v1220 = vpack.c.b16 %v1209, %v1208
    %v1221 = vpack.c.b16 %v1211, %v1210
    %v1222 = vpack.c.b16 %v1213, %v1212
    %v1223 = vpack.c.b16 %v1215, %v1214
    %1232 = vmatpush.bf16.msra.mxu0 %v1223
    %1233 = vmatpush.bf16.msra.mxu0 %v1222
    %1234 = vmatpush.bf16.msra.mxu0 %v1221
    %1235 = vmatpush.bf16.msra.mxu0 %v1220
    %1236 = vmatpush.bf16.msra.mxu0 %v1219
    %1237 = vmatpush.bf16.msra.mxu0 %v1218
    %1238 = vmatpush.bf16.msra.mxu0 %v1217
    %1239 = vmatpush.bf16.msra.mxu0 %v1216
    %1240 = vmatmul.bf16.gmra.mxu0 %v1164
    %v1241 = vpop.f32.mrf.mxu0
    %v1242 = vadd.f32 %v1183, %v1241
    %v1243 = vpop.f32.mrf.mxu0
    %v1244 = vadd.f32 %v1183, %v1243
    %1245 = vdwg.mxu0
    %v1246 = vmax.f32 %v1242, 0.0
    %v1247 = vmax.f32 %v1244, 0.0
    %v1248 = vadd.f32 %v994, %v1246
    %v1249 = vadd.f32 %v995, %v1247
    %1250 = vst [vmem:[%s10] sm:$0xff] %v1248
    %1251 = vst [vmem:[%s10 + $0x8] sm:$0xff] %v1249
  $region45: #{mpnn_model_forward.4} parent=0 // pred_fallthru
    _
  // Predicated region
  $region46: #{mpnn_model_forward.4} parent=0 // pred_check
    _
  $region47: #{mpnn_model_forward.4} parent=0 // pred_check_branch
    %1253 = sbr.rel (0) target = $region49
  $region48: #{mpnn_model_forward.4} parent=0 // pred_region
    _
  $region49: #{mpnn_model_forward.4} parent=0 // pred_fallthru
    _
  // Predicated region
  $region50: #{mpnn_model_forward.4} parent=0 // pred_check
    _
  $region51: #{mpnn_model_forward.4} parent=0 // pred_check_branch
    %1255 = sbr.rel (0) target = $region53
  $region52: #{mpnn_model_forward.4} parent=0 // pred_region
    _
  $region53: #{mpnn_model_forward.4} parent=0 // pred_fallthru
    _

</llo_original>
